<compile_context>
chip_gen: v5e
topology: v5e:2x2
jax: 0.10.0
libtpu: 0.0.40
codegen_flags: <defaults>
</compile_context>

<pallas_src>
import jax
import jax.numpy as jnp
from jax.experimental import pallas as pl
from jax.experimental.pallas import tpu as pltpu


# ----------------------------------------------------------------------------
# Fused kernel factory: all layers in one kernel body.
#   inputs : x (T, TB, Din) block, then per layer [w_ih, w_hh, b] (readout last)
#   output : (TB, Dout) = last layer, last time step hidden state
# ----------------------------------------------------------------------------
def _make_fused_kernel(layer_dims, T, TB):
    n_layers = len(layer_dims)

    def kernel(x_ref, *args):
        w_refs = args[: 3 * n_layers]
        out_ref = args[3 * n_layers]

        # Layer 0 input projections, one per timestep. They are mutually
        # independent and independent of the recurrence, so the scheduler can
        # pipeline the MXU pushes freely. (0.5 gate scale already folded into
        # the weights by the wrapper -> no in-kernel array constants.)
        wih0 = w_refs[0][...]                       # (Din, 4H), pre-scaled
        b0 = w_refs[2][...]                         # (1,   4H), pre-scaled
        xw = [
            jnp.dot(x_ref[t], wih0, preferred_element_type=jnp.float32) + b0
            for t in range(T)
        ]

        h_t = None
        for layer, (_, h) in enumerate(layer_dims):
            whh = w_refs[3 * layer + 1][...]        # (h, 4h), pre-scaled
            is_last = layer == n_layers - 1
            if not is_last:
                wih_next = w_refs[3 * (layer + 1) + 0][...]
                b_next = w_refs[3 * (layer + 1) + 2][...]

            h_t = jnp.zeros((TB, h), jnp.float32)
            c_t = jnp.zeros((TB, h), jnp.float32)
            xw_next = []

            for t in range(T):                      # static unroll (T small)
                gates = xw[t] + jnp.dot(
                    h_t, whh, preferred_element_type=jnp.float32)   # (TB, 4h)
                # One full-lane tanh covers all four gates:
                # sigmoid(z) = 0.5*(1 + tanh(z/2)); i/f/o columns were
                # pre-scaled by 0.5 in the weights, g columns left at 1.0.
                tg = jnp.tanh(gates)
                i_g = 0.5 * (1.0 + tg[:, 0 * h:1 * h])
                f_g = 0.5 * (1.0 + tg[:, 1 * h:2 * h])
                g_g = tg[:, 2 * h:3 * h]
                o_g = 0.5 * (1.0 + tg[:, 3 * h:4 * h])
                c_t = f_g * c_t + i_g * g_g
                h_t = o_g * jnp.tanh(c_t)
                if not is_last:
                    # Wavefront: next layer's x-projection for step t is issued
                    # here, right after h_t — it is OFF this layer's serial
                    # chain and overlaps with step t+1's h @ W_hh push.
                    xw_next.append(
                        jnp.dot(h_t, wih_next,
                                preferred_element_type=jnp.float32) + b_next)
            xw = xw_next

        out_ref[...] = h_t.astype(out_ref.dtype)    # (TB, Dout): last step only

    return kernel


# ----------------------------------------------------------------------------
# Wrapper: gate-scale folding, padding, layout, pallas_call plumbing.
# ----------------------------------------------------------------------------
def _fold_gate_scale(w_ih, w_hh, b):
    """Fold the sigmoid-via-tanh pre-scale into the weights (gate order i,f,g,o):
    columns of the i/f/o gates scaled by 0.5, g-gate columns untouched."""
    h = w_hh.shape[0]
    scale = jnp.concatenate([
        jnp.full((2 * h,), 0.5, jnp.float32),   # i, f
        jnp.ones((h,), jnp.float32),            # g
        jnp.full((h,), 0.5, jnp.float32),       # o
    ])
    return w_ih * scale, w_hh * scale, b * scale


def timeseries_lstm_forward(inputs, params):
    """inputs: (B, T, D_in) batch-first, like the PyTorch module -> (B, 1, n_out)."""
    B, T, Din = inputs.shape

    # Pad batch so every in-kernel tile is aligned; tile the batch axis so a
    # "parallel" grid dimension can shard rows across TensorCores at scale.
    if B <= 128:
        Bp = ((B + 7) // 8) * 8
        TB = Bp
    else:
        TB = 128
        Bp = ((B + 127) // 128) * 128

    x = jnp.transpose(inputs, (1, 0, 2))            # time-major (T, B, Din)
    if Bp != B:
        x = jnp.pad(x, ((0, 0), (0, Bp - B), (0, 0)))

    layers = [_fold_gate_scale(*layer)
              for layer in (list(params["lstm"]) + [params["readout"]])]
    layer_dims = tuple((w_ih.shape[0], w_hh.shape[0]) for (w_ih, w_hh, _) in layers)
    Dout = layer_dims[-1][1]

    flat_w = []
    in_specs = [pl.BlockSpec((T, TB, Din), lambda b: (0, b, 0))]
    for (w_ih, w_hh, bias) in layers:
        flat_w += [w_ih, w_hh, bias]
        in_specs += [
            pl.BlockSpec(w_ih.shape, lambda b: (0, 0)),
            pl.BlockSpec(w_hh.shape, lambda b: (0, 0)),
            pl.BlockSpec(bias.shape, lambda b: (0, 0)),
        ]

    out = pl.pallas_call(
        _make_fused_kernel(layer_dims, T, TB),
        out_shape=jax.ShapeDtypeStruct((Bp, Dout), inputs.dtype),
        grid=(Bp // TB,),
        in_specs=in_specs,
        out_specs=pl.BlockSpec((TB, Dout), lambda b: (b, 0)),
        compiler_params=pltpu.CompilerParams(
            dimension_semantics=("parallel",),
        ),
    )(x, *flat_w)

    return out[:B][:, None, :]                      # (B, 1, n_out) == unsqueeze(1)


# ----------------------------------------------------------------------------
# Parameter construction (uniform(-1/sqrt(H), 1/sqrt(H)), like torch.nn.LSTM).
# ----------------------------------------------------------------------------
def init_params(key, n_input, n_hidden, n_output, n_hidden_layers):
    params = {"lstm": [], "readout": None}

    def make_layer(k, din, h):
        bound = 1.0 / jnp.sqrt(jnp.float32(h))
        k1, k2, k3, k4 = jax.random.split(k, 4)
        w_ih = jax.random.uniform(k1, (din, 4 * h), jnp.float32, -bound, bound)
        w_hh = jax.random.uniform(k2, (h, 4 * h), jnp.float32, -bound, bound)
        b_ih = jax.random.uniform(k3, (4 * h,), jnp.float32, -bound, bound)
        b_hh = jax.random.uniform(k4, (4 * h,), jnp.float32, -bound, bound)
        return w_ih, w_hh, (b_ih + b_hh).reshape(1, 4 * h)

    keys = jax.random.split(key, n_hidden_layers + 1)
    din = n_input
    for layer in range(n_hidden_layers):
        params["lstm"].append(make_layer(keys[layer], din, n_hidden))
        din = n_hidden
    params["readout"] = make_layer(keys[-1], n_hidden, n_output)
    return params


# ----------------------------------------------------------------------------
# Pure-JAX reference (faithful sigmoid/tanh, PyTorch nn.LSTM semantics).
# ----------------------------------------------------------------------------
def _ref_lstm_layer(x_tm, w_ih, w_hh, b):
    T, B, _ = x_tm.shape
    H = w_hh.shape[0]

    def step(carry, x_t):
        h, c = carry
        gates = x_t @ w_ih + h @ w_hh + b
        i = jax.nn.sigmoid(gates[:, 0 * H:1 * H])
        f = jax.nn.sigmoid(gates[:, 1 * H:2 * H])
        g = jnp.tanh(gates[:, 2 * H:3 * H])
        o = jax.nn.sigmoid(gates[:, 3 * H:4 * H])
        c = f * c + i * g
        h = o * jnp.tanh(c)
        return (h, c), h

    init = (jnp.zeros((B, H), jnp.float32), jnp.zeros((B, H), jnp.float32))
    _, ys = jax.lax.scan(step, init, x_tm)
    return ys


def _ref_forward(inputs, params):
    x = jnp.transpose(inputs, (1, 0, 2))
    for (w_ih, w_hh, b) in params["lstm"]:
        x = _ref_lstm_layer(x, w_ih, w_hh, b)
    w_ih, w_hh, b = params["readout"]
    y = _ref_lstm_layer(x, w_ih, w_hh, b)
    return y[-1][:, None, :]


if __name__ == "__main__":
    # batch=2, seq=8, n_input_state_variables=4, n_hidden_state_variables=32,
    # n_hidden_layers=2, n_output_state_variables=4.
    B, T, D_IN, H, N_LAYERS, D_OUT = 2, 8, 4, 32, 2, 4

    key = jax.random.PRNGKey(0)
    k_x, k_p = jax.random.split(key)
    inputs = jax.random.normal(k_x, (B, T, D_IN), dtype=jnp.float32)
    params = init_params(k_p, D_IN, H, D_OUT, N_LAYERS)

    out = jax.block_until_ready(timeseries_lstm_forward(inputs, params))
    ref = jax.block_until_ready(_ref_forward(inputs, params))

    assert out.shape == (B, 1, D_OUT), out.shape
    # sigmoid-via-tanh inside the kernel differs from jax.nn.sigmoid only by
    # the hardware tanh approximation (~1e-6); 1e-4 keeps margin.
    assert jnp.allclose(out, ref, atol=1e-4, rtol=1e-4), "mismatch vs reference"
    print("KERNEL_OK")
</pallas_src>

<mosaic_0001>
module attributes {stable_mosaic.version = 11 : i64} {
  func.func @kernel(%arg0: i32, %arg1: memref<8x8x4xf32, #tpu.memory_space<vmem>>, %arg2: memref<4x128xf32, #tpu.memory_space<vmem>>, %arg3: memref<32x128xf32, #tpu.memory_space<vmem>>, %arg4: memref<1x128xf32, #tpu.memory_space<vmem>>, %arg5: memref<32x128xf32, #tpu.memory_space<vmem>>, %arg6: memref<32x128xf32, #tpu.memory_space<vmem>>, %arg7: memref<1x128xf32, #tpu.memory_space<vmem>>, %arg8: memref<32x16xf32, #tpu.memory_space<vmem>>, %arg9: memref<4x16xf32, #tpu.memory_space<vmem>>, %arg10: memref<1x16xf32, #tpu.memory_space<vmem>>, %arg11: memref<8x4xf32, #tpu.memory_space<vmem>>) attributes {dimension_semantics = [#tpu.dimension_semantics<parallel>], iteration_bounds = array<i64: 1>, scalar_prefetch = 0 : i64, scratch_operands = 0 : i64, tpu.core_type = #tpu.core_type<tc>, window_params = [{transform_indices = @transform_0, window_bounds = array<i64: 8, 8, 4>}, {pipeline_mode = #tpu.pipeline_mode<synchronous>, transform_indices = @transform_1, window_bounds = array<i64: 4, 128>}, {pipeline_mode = #tpu.pipeline_mode<synchronous>, transform_indices = @transform_2, window_bounds = array<i64: 32, 128>}, {pipeline_mode = #tpu.pipeline_mode<synchronous>, transform_indices = @transform_3, window_bounds = array<i64: 1, 128>}, {pipeline_mode = #tpu.pipeline_mode<synchronous>, transform_indices = @transform_4, window_bounds = array<i64: 32, 128>}, {pipeline_mode = #tpu.pipeline_mode<synchronous>, transform_indices = @transform_5, window_bounds = array<i64: 32, 128>}, {pipeline_mode = #tpu.pipeline_mode<synchronous>, transform_indices = @transform_6, window_bounds = array<i64: 1, 128>}, {pipeline_mode = #tpu.pipeline_mode<synchronous>, transform_indices = @transform_7, window_bounds = array<i64: 32, 16>}, {pipeline_mode = #tpu.pipeline_mode<synchronous>, transform_indices = @transform_8, window_bounds = array<i64: 4, 16>}, {pipeline_mode = #tpu.pipeline_mode<synchronous>, transform_indices = @transform_9, window_bounds = array<i64: 1, 16>}, {transform_indices = @transform_10, window_bounds = array<i64: 8, 4>}]} {
    %c0 = arith.constant 0 : index
    %c0_0 = arith.constant 0 : index
    %0 = vector.load %arg2[%c0, %c0_0] : memref<4x128xf32, #tpu.memory_space<vmem>>, vector<4x128xf32>
    %c0_1 = arith.constant 0 : index
    %c0_2 = arith.constant 0 : index
    %1 = vector.load %arg4[%c0_1, %c0_2] : memref<1x128xf32, #tpu.memory_space<vmem>>, vector<1x128xf32>
    %c0_3 = arith.constant 0 : index
    %c0_4 = arith.constant 0 : index
    %c0_5 = arith.constant 0 : index
    %2 = vector.load %arg1[%c0_3, %c0_4, %c0_5] : memref<8x8x4xf32, #tpu.memory_space<vmem>>, vector<1x8x4xf32>
    %3 = vector.shape_cast %2 : vector<1x8x4xf32> to vector<8x4xf32>
    %cst = arith.constant dense<0.000000e+00> : vector<8x128xf32>
    %4 = tpu.matmul %3, %0, %cst {dimension_numbers = #tpu.dot_dimension_numbers<[1], [0], [0], [1], [0, 0, 1, 1], [], []>} : vector<8x4xf32>, vector<4x128xf32>, vector<8x128xf32> -> vector<8x128xf32>
    %5 = vector.broadcast %1 : vector<1x128xf32> to vector<8x128xf32>
    %6 = arith.addf %4, %5 : vector<8x128xf32>
    %c1 = arith.constant 1 : index
    %c0_6 = arith.constant 0 : index
    %c0_7 = arith.constant 0 : index
    %7 = vector.load %arg1[%c1, %c0_6, %c0_7] : memref<8x8x4xf32, #tpu.memory_space<vmem>>, vector<1x8x4xf32>
    %8 = vector.shape_cast %7 : vector<1x8x4xf32> to vector<8x4xf32>
    %cst_8 = arith.constant dense<0.000000e+00> : vector<8x128xf32>
    %9 = tpu.matmul %8, %0, %cst_8 {dimension_numbers = #tpu.dot_dimension_numbers<[1], [0], [0], [1], [0, 0, 1, 1], [], []>} : vector<8x4xf32>, vector<4x128xf32>, vector<8x128xf32> -> vector<8x128xf32>
    %10 = vector.broadcast %1 : vector<1x128xf32> to vector<8x128xf32>
    %11 = arith.addf %9, %10 : vector<8x128xf32>
    %c2 = arith.constant 2 : index
    %c0_9 = arith.constant 0 : index
    %c0_10 = arith.constant 0 : index
    %12 = vector.load %arg1[%c2, %c0_9, %c0_10] : memref<8x8x4xf32, #tpu.memory_space<vmem>>, vector<1x8x4xf32>
    %13 = vector.shape_cast %12 : vector<1x8x4xf32> to vector<8x4xf32>
    %cst_11 = arith.constant dense<0.000000e+00> : vector<8x128xf32>
    %14 = tpu.matmul %13, %0, %cst_11 {dimension_numbers = #tpu.dot_dimension_numbers<[1], [0], [0], [1], [0, 0, 1, 1], [], []>} : vector<8x4xf32>, vector<4x128xf32>, vector<8x128xf32> -> vector<8x128xf32>
    %15 = vector.broadcast %1 : vector<1x128xf32> to vector<8x128xf32>
    %16 = arith.addf %14, %15 : vector<8x128xf32>
    %c3 = arith.constant 3 : index
    %c0_12 = arith.constant 0 : index
    %c0_13 = arith.constant 0 : index
    %17 = vector.load %arg1[%c3, %c0_12, %c0_13] : memref<8x8x4xf32, #tpu.memory_space<vmem>>, vector<1x8x4xf32>
    %18 = vector.shape_cast %17 : vector<1x8x4xf32> to vector<8x4xf32>
    %cst_14 = arith.constant dense<0.000000e+00> : vector<8x128xf32>
    %19 = tpu.matmul %18, %0, %cst_14 {dimension_numbers = #tpu.dot_dimension_numbers<[1], [0], [0], [1], [0, 0, 1, 1], [], []>} : vector<8x4xf32>, vector<4x128xf32>, vector<8x128xf32> -> vector<8x128xf32>
    %20 = vector.broadcast %1 : vector<1x128xf32> to vector<8x128xf32>
    %21 = arith.addf %19, %20 : vector<8x128xf32>
    %c4 = arith.constant 4 : index
    %c0_15 = arith.constant 0 : index
    %c0_16 = arith.constant 0 : index
    %22 = vector.load %arg1[%c4, %c0_15, %c0_16] : memref<8x8x4xf32, #tpu.memory_space<vmem>>, vector<1x8x4xf32>
    %23 = vector.shape_cast %22 : vector<1x8x4xf32> to vector<8x4xf32>
    %cst_17 = arith.constant dense<0.000000e+00> : vector<8x128xf32>
    %24 = tpu.matmul %23, %0, %cst_17 {dimension_numbers = #tpu.dot_dimension_numbers<[1], [0], [0], [1], [0, 0, 1, 1], [], []>} : vector<8x4xf32>, vector<4x128xf32>, vector<8x128xf32> -> vector<8x128xf32>
    %25 = vector.broadcast %1 : vector<1x128xf32> to vector<8x128xf32>
    %26 = arith.addf %24, %25 : vector<8x128xf32>
    %c5 = arith.constant 5 : index
    %c0_18 = arith.constant 0 : index
    %c0_19 = arith.constant 0 : index
    %27 = vector.load %arg1[%c5, %c0_18, %c0_19] : memref<8x8x4xf32, #tpu.memory_space<vmem>>, vector<1x8x4xf32>
    %28 = vector.shape_cast %27 : vector<1x8x4xf32> to vector<8x4xf32>
    %cst_20 = arith.constant dense<0.000000e+00> : vector<8x128xf32>
    %29 = tpu.matmul %28, %0, %cst_20 {dimension_numbers = #tpu.dot_dimension_numbers<[1], [0], [0], [1], [0, 0, 1, 1], [], []>} : vector<8x4xf32>, vector<4x128xf32>, vector<8x128xf32> -> vector<8x128xf32>
    %30 = vector.broadcast %1 : vector<1x128xf32> to vector<8x128xf32>
    %31 = arith.addf %29, %30 : vector<8x128xf32>
    %c6 = arith.constant 6 : index
    %c0_21 = arith.constant 0 : index
    %c0_22 = arith.constant 0 : index
    %32 = vector.load %arg1[%c6, %c0_21, %c0_22] : memref<8x8x4xf32, #tpu.memory_space<vmem>>, vector<1x8x4xf32>
    %33 = vector.shape_cast %32 : vector<1x8x4xf32> to vector<8x4xf32>
    %cst_23 = arith.constant dense<0.000000e+00> : vector<8x128xf32>
    %34 = tpu.matmul %33, %0, %cst_23 {dimension_numbers = #tpu.dot_dimension_numbers<[1], [0], [0], [1], [0, 0, 1, 1], [], []>} : vector<8x4xf32>, vector<4x128xf32>, vector<8x128xf32> -> vector<8x128xf32>
    %35 = vector.broadcast %1 : vector<1x128xf32> to vector<8x128xf32>
    %36 = arith.addf %34, %35 : vector<8x128xf32>
    %c7 = arith.constant 7 : index
    %c0_24 = arith.constant 0 : index
    %c0_25 = arith.constant 0 : index
    %37 = vector.load %arg1[%c7, %c0_24, %c0_25] : memref<8x8x4xf32, #tpu.memory_space<vmem>>, vector<1x8x4xf32>
    %38 = vector.shape_cast %37 : vector<1x8x4xf32> to vector<8x4xf32>
    %cst_26 = arith.constant dense<0.000000e+00> : vector<8x128xf32>
    %39 = tpu.matmul %38, %0, %cst_26 {dimension_numbers = #tpu.dot_dimension_numbers<[1], [0], [0], [1], [0, 0, 1, 1], [], []>} : vector<8x4xf32>, vector<4x128xf32>, vector<8x128xf32> -> vector<8x128xf32>
    %40 = vector.broadcast %1 : vector<1x128xf32> to vector<8x128xf32>
    %41 = arith.addf %39, %40 : vector<8x128xf32>
    %c0_27 = arith.constant 0 : index
    %c0_28 = arith.constant 0 : index
    %42 = vector.load %arg3[%c0_27, %c0_28] : memref<32x128xf32, #tpu.memory_space<vmem>>, vector<32x128xf32>
    %c0_29 = arith.constant 0 : index
    %c0_30 = arith.constant 0 : index
    %43 = vector.load %arg5[%c0_29, %c0_30] : memref<32x128xf32, #tpu.memory_space<vmem>>, vector<32x128xf32>
    %c0_31 = arith.constant 0 : index
    %c0_32 = arith.constant 0 : index
    %44 = vector.load %arg7[%c0_31, %c0_32] : memref<1x128xf32, #tpu.memory_space<vmem>>, vector<1x128xf32>
    %cst_33 = arith.constant 0.000000e+00 : f32
    %45 = vector.broadcast %cst_33 : f32 to vector<8x32xf32>
    %cst_34 = arith.constant 0.000000e+00 : f32
    %46 = vector.broadcast %cst_34 : f32 to vector<8x32xf32>
    %cst_35 = arith.constant dense<0.000000e+00> : vector<8x128xf32>
    %47 = tpu.matmul %45, %42, %cst_35 {dimension_numbers = #tpu.dot_dimension_numbers<[1], [0], [0], [1], [0, 0, 1, 1], [], []>} : vector<8x32xf32>, vector<32x128xf32>, vector<8x128xf32> -> vector<8x128xf32>
    %48 = arith.addf %6, %47 : vector<8x128xf32>
    %49 = math.tanh %48 : vector<8x128xf32>
    %50 = vector.extract_strided_slice %49 {offsets = [0, 0], sizes = [8, 32], strides = [1, 1]} : vector<8x128xf32> to vector<8x32xf32>
    %cst_36 = arith.constant 1.000000e+00 : f32
    %51 = vector.broadcast %cst_36 : f32 to vector<8x32xf32>
    %52 = arith.addf %51, %50 : vector<8x32xf32>
    %cst_37 = arith.constant 5.000000e-01 : f32
    %53 = vector.broadcast %cst_37 : f32 to vector<8x32xf32>
    %54 = arith.mulf %53, %52 : vector<8x32xf32>
    %55 = vector.extract_strided_slice %49 {offsets = [0, 32], sizes = [8, 32], strides = [1, 1]} : vector<8x128xf32> to vector<8x32xf32>
    %cst_38 = arith.constant 1.000000e+00 : f32
    %56 = vector.broadcast %cst_38 : f32 to vector<8x32xf32>
    %57 = arith.addf %56, %55 : vector<8x32xf32>
    %cst_39 = arith.constant 5.000000e-01 : f32
    %58 = vector.broadcast %cst_39 : f32 to vector<8x32xf32>
    %59 = arith.mulf %58, %57 : vector<8x32xf32>
    %60 = vector.extract_strided_slice %49 {offsets = [0, 64], sizes = [8, 32], strides = [1, 1]} : vector<8x128xf32> to vector<8x32xf32>
    %61 = vector.extract_strided_slice %49 {offsets = [0, 96], sizes = [8, 32], strides = [1, 1]} : vector<8x128xf32> to vector<8x32xf32>
    %cst_40 = arith.constant 1.000000e+00 : f32
    %62 = vector.broadcast %cst_40 : f32 to vector<8x32xf32>
    %63 = arith.addf %62, %61 : vector<8x32xf32>
    %cst_41 = arith.constant 5.000000e-01 : f32
    %64 = vector.broadcast %cst_41 : f32 to vector<8x32xf32>
    %65 = arith.mulf %64, %63 : vector<8x32xf32>
    %66 = arith.mulf %59, %46 : vector<8x32xf32>
    %67 = arith.mulf %54, %60 : vector<8x32xf32>
    %68 = arith.addf %66, %67 : vector<8x32xf32>
    %69 = math.tanh %68 : vector<8x32xf32>
    %70 = arith.mulf %65, %69 : vector<8x32xf32>
    %cst_42 = arith.constant dense<0.000000e+00> : vector<8x128xf32>
    %71 = tpu.matmul %70, %43, %cst_42 {dimension_numbers = #tpu.dot_dimension_numbers<[1], [0], [0], [1], [0, 0, 1, 1], [], []>} : vector<8x32xf32>, vector<32x128xf32>, vector<8x128xf32> -> vector<8x128xf32>
    %72 = vector.broadcast %44 : vector<1x128xf32> to vector<8x128xf32>
    %73 = arith.addf %71, %72 : vector<8x128xf32>
    %cst_43 = arith.constant dense<0.000000e+00> : vector<8x128xf32>
    %74 = tpu.matmul %70, %42, %cst_43 {dimension_numbers = #tpu.dot_dimension_numbers<[1], [0], [0], [1], [0, 0, 1, 1], [], []>} : vector<8x32xf32>, vector<32x128xf32>, vector<8x128xf32> -> vector<8x128xf32>
    %75 = arith.addf %11, %74 : vector<8x128xf32>
    %76 = math.tanh %75 : vector<8x128xf32>
    %77 = vector.extract_strided_slice %76 {offsets = [0, 0], sizes = [8, 32], strides = [1, 1]} : vector<8x128xf32> to vector<8x32xf32>
    %cst_44 = arith.constant 1.000000e+00 : f32
    %78 = vector.broadcast %cst_44 : f32 to vector<8x32xf32>
    %79 = arith.addf %78, %77 : vector<8x32xf32>
    %cst_45 = arith.constant 5.000000e-01 : f32
    %80 = vector.broadcast %cst_45 : f32 to vector<8x32xf32>
    %81 = arith.mulf %80, %79 : vector<8x32xf32>
    %82 = vector.extract_strided_slice %76 {offsets = [0, 32], sizes = [8, 32], strides = [1, 1]} : vector<8x128xf32> to vector<8x32xf32>
    %cst_46 = arith.constant 1.000000e+00 : f32
    %83 = vector.broadcast %cst_46 : f32 to vector<8x32xf32>
    %84 = arith.addf %83, %82 : vector<8x32xf32>
    %cst_47 = arith.constant 5.000000e-01 : f32
    %85 = vector.broadcast %cst_47 : f32 to vector<8x32xf32>
    %86 = arith.mulf %85, %84 : vector<8x32xf32>
    %87 = vector.extract_strided_slice %76 {offsets = [0, 64], sizes = [8, 32], strides = [1, 1]} : vector<8x128xf32> to vector<8x32xf32>
    %88 = vector.extract_strided_slice %76 {offsets = [0, 96], sizes = [8, 32], strides = [1, 1]} : vector<8x128xf32> to vector<8x32xf32>
    %cst_48 = arith.constant 1.000000e+00 : f32
    %89 = vector.broadcast %cst_48 : f32 to vector<8x32xf32>
    %90 = arith.addf %89, %88 : vector<8x32xf32>
    %cst_49 = arith.constant 5.000000e-01 : f32
    %91 = vector.broadcast %cst_49 : f32 to vector<8x32xf32>
    %92 = arith.mulf %91, %90 : vector<8x32xf32>
    %93 = arith.mulf %86, %68 : vector<8x32xf32>
    %94 = arith.mulf %81, %87 : vector<8x32xf32>
    %95 = arith.addf %93, %94 : vector<8x32xf32>
    %96 = math.tanh %95 : vector<8x32xf32>
    %97 = arith.mulf %92, %96 : vector<8x32xf32>
    %cst_50 = arith.constant dense<0.000000e+00> : vector<8x128xf32>
    %98 = tpu.matmul %97, %43, %cst_50 {dimension_numbers = #tpu.dot_dimension_numbers<[1], [0], [0], [1], [0, 0, 1, 1], [], []>} : vector<8x32xf32>, vector<32x128xf32>, vector<8x128xf32> -> vector<8x128xf32>
    %99 = vector.broadcast %44 : vector<1x128xf32> to vector<8x128xf32>
    %100 = arith.addf %98, %99 : vector<8x128xf32>
    %cst_51 = arith.constant dense<0.000000e+00> : vector<8x128xf32>
    %101 = tpu.matmul %97, %42, %cst_51 {dimension_numbers = #tpu.dot_dimension_numbers<[1], [0], [0], [1], [0, 0, 1, 1], [], []>} : vector<8x32xf32>, vector<32x128xf32>, vector<8x128xf32> -> vector<8x128xf32>
    %102 = arith.addf %16, %101 : vector<8x128xf32>
    %103 = math.tanh %102 : vector<8x128xf32>
    %104 = vector.extract_strided_slice %103 {offsets = [0, 0], sizes = [8, 32], strides = [1, 1]} : vector<8x128xf32> to vector<8x32xf32>
    %cst_52 = arith.constant 1.000000e+00 : f32
    %105 = vector.broadcast %cst_52 : f32 to vector<8x32xf32>
    %106 = arith.addf %105, %104 : vector<8x32xf32>
    %cst_53 = arith.constant 5.000000e-01 : f32
    %107 = vector.broadcast %cst_53 : f32 to vector<8x32xf32>
    %108 = arith.mulf %107, %106 : vector<8x32xf32>
    %109 = vector.extract_strided_slice %103 {offsets = [0, 32], sizes = [8, 32], strides = [1, 1]} : vector<8x128xf32> to vector<8x32xf32>
    %cst_54 = arith.constant 1.000000e+00 : f32
    %110 = vector.broadcast %cst_54 : f32 to vector<8x32xf32>
    %111 = arith.addf %110, %109 : vector<8x32xf32>
    %cst_55 = arith.constant 5.000000e-01 : f32
    %112 = vector.broadcast %cst_55 : f32 to vector<8x32xf32>
    %113 = arith.mulf %112, %111 : vector<8x32xf32>
    %114 = vector.extract_strided_slice %103 {offsets = [0, 64], sizes = [8, 32], strides = [1, 1]} : vector<8x128xf32> to vector<8x32xf32>
    %115 = vector.extract_strided_slice %103 {offsets = [0, 96], sizes = [8, 32], strides = [1, 1]} : vector<8x128xf32> to vector<8x32xf32>
    %cst_56 = arith.constant 1.000000e+00 : f32
    %116 = vector.broadcast %cst_56 : f32 to vector<8x32xf32>
    %117 = arith.addf %116, %115 : vector<8x32xf32>
    %cst_57 = arith.constant 5.000000e-01 : f32
    %118 = vector.broadcast %cst_57 : f32 to vector<8x32xf32>
    %119 = arith.mulf %118, %117 : vector<8x32xf32>
    %120 = arith.mulf %113, %95 : vector<8x32xf32>
    %121 = arith.mulf %108, %114 : vector<8x32xf32>
    %122 = arith.addf %120, %121 : vector<8x32xf32>
    %123 = math.tanh %122 : vector<8x32xf32>
    %124 = arith.mulf %119, %123 : vector<8x32xf32>
    %cst_58 = arith.constant dense<0.000000e+00> : vector<8x128xf32>
    %125 = tpu.matmul %124, %43, %cst_58 {dimension_numbers = #tpu.dot_dimension_numbers<[1], [0], [0], [1], [0, 0, 1, 1], [], []>} : vector<8x32xf32>, vector<32x128xf32>, vector<8x128xf32> -> vector<8x128xf32>
    %126 = vector.broadcast %44 : vector<1x128xf32> to vector<8x128xf32>
    %127 = arith.addf %125, %126 : vector<8x128xf32>
    %cst_59 = arith.constant dense<0.000000e+00> : vector<8x128xf32>
    %128 = tpu.matmul %124, %42, %cst_59 {dimension_numbers = #tpu.dot_dimension_numbers<[1], [0], [0], [1], [0, 0, 1, 1], [], []>} : vector<8x32xf32>, vector<32x128xf32>, vector<8x128xf32> -> vector<8x128xf32>
    %129 = arith.addf %21, %128 : vector<8x128xf32>
    %130 = math.tanh %129 : vector<8x128xf32>
    %131 = vector.extract_strided_slice %130 {offsets = [0, 0], sizes = [8, 32], strides = [1, 1]} : vector<8x128xf32> to vector<8x32xf32>
    %cst_60 = arith.constant 1.000000e+00 : f32
    %132 = vector.broadcast %cst_60 : f32 to vector<8x32xf32>
    %133 = arith.addf %132, %131 : vector<8x32xf32>
    %cst_61 = arith.constant 5.000000e-01 : f32
    %134 = vector.broadcast %cst_61 : f32 to vector<8x32xf32>
    %135 = arith.mulf %134, %133 : vector<8x32xf32>
    %136 = vector.extract_strided_slice %130 {offsets = [0, 32], sizes = [8, 32], strides = [1, 1]} : vector<8x128xf32> to vector<8x32xf32>
    %cst_62 = arith.constant 1.000000e+00 : f32
    %137 = vector.broadcast %cst_62 : f32 to vector<8x32xf32>
    %138 = arith.addf %137, %136 : vector<8x32xf32>
    %cst_63 = arith.constant 5.000000e-01 : f32
    %139 = vector.broadcast %cst_63 : f32 to vector<8x32xf32>
    %140 = arith.mulf %139, %138 : vector<8x32xf32>
    %141 = vector.extract_strided_slice %130 {offsets = [0, 64], sizes = [8, 32], strides = [1, 1]} : vector<8x128xf32> to vector<8x32xf32>
    %142 = vector.extract_strided_slice %130 {offsets = [0, 96], sizes = [8, 32], strides = [1, 1]} : vector<8x128xf32> to vector<8x32xf32>
    %cst_64 = arith.constant 1.000000e+00 : f32
    %143 = vector.broadcast %cst_64 : f32 to vector<8x32xf32>
    %144 = arith.addf %143, %142 : vector<8x32xf32>
    %cst_65 = arith.constant 5.000000e-01 : f32
    %145 = vector.broadcast %cst_65 : f32 to vector<8x32xf32>
    %146 = arith.mulf %145, %144 : vector<8x32xf32>
    %147 = arith.mulf %140, %122 : vector<8x32xf32>
    %148 = arith.mulf %135, %141 : vector<8x32xf32>
    %149 = arith.addf %147, %148 : vector<8x32xf32>
    %150 = math.tanh %149 : vector<8x32xf32>
    %151 = arith.mulf %146, %150 : vector<8x32xf32>
    %cst_66 = arith.constant dense<0.000000e+00> : vector<8x128xf32>
    %152 = tpu.matmul %151, %43, %cst_66 {dimension_numbers = #tpu.dot_dimension_numbers<[1], [0], [0], [1], [0, 0, 1, 1], [], []>} : vector<8x32xf32>, vector<32x128xf32>, vector<8x128xf32> -> vector<8x128xf32>
    %153 = vector.broadcast %44 : vector<1x128xf32> to vector<8x128xf32>
    %154 = arith.addf %152, %153 : vector<8x128xf32>
    %cst_67 = arith.constant dense<0.000000e+00> : vector<8x128xf32>
    %155 = tpu.matmul %151, %42, %cst_67 {dimension_numbers = #tpu.dot_dimension_numbers<[1], [0], [0], [1], [0, 0, 1, 1], [], []>} : vector<8x32xf32>, vector<32x128xf32>, vector<8x128xf32> -> vector<8x128xf32>
    %156 = arith.addf %26, %155 : vector<8x128xf32>
    %157 = math.tanh %156 : vector<8x128xf32>
    %158 = vector.extract_strided_slice %157 {offsets = [0, 0], sizes = [8, 32], strides = [1, 1]} : vector<8x128xf32> to vector<8x32xf32>
    %cst_68 = arith.constant 1.000000e+00 : f32
    %159 = vector.broadcast %cst_68 : f32 to vector<8x32xf32>
    %160 = arith.addf %159, %158 : vector<8x32xf32>
    %cst_69 = arith.constant 5.000000e-01 : f32
    %161 = vector.broadcast %cst_69 : f32 to vector<8x32xf32>
    %162 = arith.mulf %161, %160 : vector<8x32xf32>
    %163 = vector.extract_strided_slice %157 {offsets = [0, 32], sizes = [8, 32], strides = [1, 1]} : vector<8x128xf32> to vector<8x32xf32>
    %cst_70 = arith.constant 1.000000e+00 : f32
    %164 = vector.broadcast %cst_70 : f32 to vector<8x32xf32>
    %165 = arith.addf %164, %163 : vector<8x32xf32>
    %cst_71 = arith.constant 5.000000e-01 : f32
    %166 = vector.broadcast %cst_71 : f32 to vector<8x32xf32>
    %167 = arith.mulf %166, %165 : vector<8x32xf32>
    %168 = vector.extract_strided_slice %157 {offsets = [0, 64], sizes = [8, 32], strides = [1, 1]} : vector<8x128xf32> to vector<8x32xf32>
    %169 = vector.extract_strided_slice %157 {offsets = [0, 96], sizes = [8, 32], strides = [1, 1]} : vector<8x128xf32> to vector<8x32xf32>
    %cst_72 = arith.constant 1.000000e+00 : f32
    %170 = vector.broadcast %cst_72 : f32 to vector<8x32xf32>
    %171 = arith.addf %170, %169 : vector<8x32xf32>
    %cst_73 = arith.constant 5.000000e-01 : f32
    %172 = vector.broadcast %cst_73 : f32 to vector<8x32xf32>
    %173 = arith.mulf %172, %171 : vector<8x32xf32>
    %174 = arith.mulf %167, %149 : vector<8x32xf32>
    %175 = arith.mulf %162, %168 : vector<8x32xf32>
    %176 = arith.addf %174, %175 : vector<8x32xf32>
    %177 = math.tanh %176 : vector<8x32xf32>
    %178 = arith.mulf %173, %177 : vector<8x32xf32>
    %cst_74 = arith.constant dense<0.000000e+00> : vector<8x128xf32>
    %179 = tpu.matmul %178, %43, %cst_74 {dimension_numbers = #tpu.dot_dimension_numbers<[1], [0], [0], [1], [0, 0, 1, 1], [], []>} : vector<8x32xf32>, vector<32x128xf32>, vector<8x128xf32> -> vector<8x128xf32>
    %180 = vector.broadcast %44 : vector<1x128xf32> to vector<8x128xf32>
    %181 = arith.addf %179, %180 : vector<8x128xf32>
    %cst_75 = arith.constant dense<0.000000e+00> : vector<8x128xf32>
    %182 = tpu.matmul %178, %42, %cst_75 {dimension_numbers = #tpu.dot_dimension_numbers<[1], [0], [0], [1], [0, 0, 1, 1], [], []>} : vector<8x32xf32>, vector<32x128xf32>, vector<8x128xf32> -> vector<8x128xf32>
    %183 = arith.addf %31, %182 : vector<8x128xf32>
    %184 = math.tanh %183 : vector<8x128xf32>
    %185 = vector.extract_strided_slice %184 {offsets = [0, 0], sizes = [8, 32], strides = [1, 1]} : vector<8x128xf32> to vector<8x32xf32>
    %cst_76 = arith.constant 1.000000e+00 : f32
    %186 = vector.broadcast %cst_76 : f32 to vector<8x32xf32>
    %187 = arith.addf %186, %185 : vector<8x32xf32>
    %cst_77 = arith.constant 5.000000e-01 : f32
    %188 = vector.broadcast %cst_77 : f32 to vector<8x32xf32>
    %189 = arith.mulf %188, %187 : vector<8x32xf32>
    %190 = vector.extract_strided_slice %184 {offsets = [0, 32], sizes = [8, 32], strides = [1, 1]} : vector<8x128xf32> to vector<8x32xf32>
    %cst_78 = arith.constant 1.000000e+00 : f32
    %191 = vector.broadcast %cst_78 : f32 to vector<8x32xf32>
    %192 = arith.addf %191, %190 : vector<8x32xf32>
    %cst_79 = arith.constant 5.000000e-01 : f32
    %193 = vector.broadcast %cst_79 : f32 to vector<8x32xf32>
    %194 = arith.mulf %193, %192 : vector<8x32xf32>
    %195 = vector.extract_strided_slice %184 {offsets = [0, 64], sizes = [8, 32], strides = [1, 1]} : vector<8x128xf32> to vector<8x32xf32>
    %196 = vector.extract_strided_slice %184 {offsets = [0, 96], sizes = [8, 32], strides = [1, 1]} : vector<8x128xf32> to vector<8x32xf32>
    %cst_80 = arith.constant 1.000000e+00 : f32
    %197 = vector.broadcast %cst_80 : f32 to vector<8x32xf32>
    %198 = arith.addf %197, %196 : vector<8x32xf32>
    %cst_81 = arith.constant 5.000000e-01 : f32
    %199 = vector.broadcast %cst_81 : f32 to vector<8x32xf32>
    %200 = arith.mulf %199, %198 : vector<8x32xf32>
    %201 = arith.mulf %194, %176 : vector<8x32xf32>
    %202 = arith.mulf %189, %195 : vector<8x32xf32>
    %203 = arith.addf %201, %202 : vector<8x32xf32>
    %204 = math.tanh %203 : vector<8x32xf32>
    %205 = arith.mulf %200, %204 : vector<8x32xf32>
    %cst_82 = arith.constant dense<0.000000e+00> : vector<8x128xf32>
    %206 = tpu.matmul %205, %43, %cst_82 {dimension_numbers = #tpu.dot_dimension_numbers<[1], [0], [0], [1], [0, 0, 1, 1], [], []>} : vector<8x32xf32>, vector<32x128xf32>, vector<8x128xf32> -> vector<8x128xf32>
    %207 = vector.broadcast %44 : vector<1x128xf32> to vector<8x128xf32>
    %208 = arith.addf %206, %207 : vector<8x128xf32>
    %cst_83 = arith.constant dense<0.000000e+00> : vector<8x128xf32>
    %209 = tpu.matmul %205, %42, %cst_83 {dimension_numbers = #tpu.dot_dimension_numbers<[1], [0], [0], [1], [0, 0, 1, 1], [], []>} : vector<8x32xf32>, vector<32x128xf32>, vector<8x128xf32> -> vector<8x128xf32>
    %210 = arith.addf %36, %209 : vector<8x128xf32>
    %211 = math.tanh %210 : vector<8x128xf32>
    %212 = vector.extract_strided_slice %211 {offsets = [0, 0], sizes = [8, 32], strides = [1, 1]} : vector<8x128xf32> to vector<8x32xf32>
    %cst_84 = arith.constant 1.000000e+00 : f32
    %213 = vector.broadcast %cst_84 : f32 to vector<8x32xf32>
    %214 = arith.addf %213, %212 : vector<8x32xf32>
    %cst_85 = arith.constant 5.000000e-01 : f32
    %215 = vector.broadcast %cst_85 : f32 to vector<8x32xf32>
    %216 = arith.mulf %215, %214 : vector<8x32xf32>
    %217 = vector.extract_strided_slice %211 {offsets = [0, 32], sizes = [8, 32], strides = [1, 1]} : vector<8x128xf32> to vector<8x32xf32>
    %cst_86 = arith.constant 1.000000e+00 : f32
    %218 = vector.broadcast %cst_86 : f32 to vector<8x32xf32>
    %219 = arith.addf %218, %217 : vector<8x32xf32>
    %cst_87 = arith.constant 5.000000e-01 : f32
    %220 = vector.broadcast %cst_87 : f32 to vector<8x32xf32>
    %221 = arith.mulf %220, %219 : vector<8x32xf32>
    %222 = vector.extract_strided_slice %211 {offsets = [0, 64], sizes = [8, 32], strides = [1, 1]} : vector<8x128xf32> to vector<8x32xf32>
    %223 = vector.extract_strided_slice %211 {offsets = [0, 96], sizes = [8, 32], strides = [1, 1]} : vector<8x128xf32> to vector<8x32xf32>
    %cst_88 = arith.constant 1.000000e+00 : f32
    %224 = vector.broadcast %cst_88 : f32 to vector<8x32xf32>
    %225 = arith.addf %224, %223 : vector<8x32xf32>
    %cst_89 = arith.constant 5.000000e-01 : f32
    %226 = vector.broadcast %cst_89 : f32 to vector<8x32xf32>
    %227 = arith.mulf %226, %225 : vector<8x32xf32>
    %228 = arith.mulf %221, %203 : vector<8x32xf32>
    %229 = arith.mulf %216, %222 : vector<8x32xf32>
    %230 = arith.addf %228, %229 : vector<8x32xf32>
    %231 = math.tanh %230 : vector<8x32xf32>
    %232 = arith.mulf %227, %231 : vector<8x32xf32>
    %cst_90 = arith.constant dense<0.000000e+00> : vector<8x128xf32>
    %233 = tpu.matmul %232, %43, %cst_90 {dimension_numbers = #tpu.dot_dimension_numbers<[1], [0], [0], [1], [0, 0, 1, 1], [], []>} : vector<8x32xf32>, vector<32x128xf32>, vector<8x128xf32> -> vector<8x128xf32>
    %234 = vector.broadcast %44 : vector<1x128xf32> to vector<8x128xf32>
    %235 = arith.addf %233, %234 : vector<8x128xf32>
    %cst_91 = arith.constant dense<0.000000e+00> : vector<8x128xf32>
    %236 = tpu.matmul %232, %42, %cst_91 {dimension_numbers = #tpu.dot_dimension_numbers<[1], [0], [0], [1], [0, 0, 1, 1], [], []>} : vector<8x32xf32>, vector<32x128xf32>, vector<8x128xf32> -> vector<8x128xf32>
    %237 = arith.addf %41, %236 : vector<8x128xf32>
    %238 = math.tanh %237 : vector<8x128xf32>
    %239 = vector.extract_strided_slice %238 {offsets = [0, 0], sizes = [8, 32], strides = [1, 1]} : vector<8x128xf32> to vector<8x32xf32>
    %cst_92 = arith.constant 1.000000e+00 : f32
    %240 = vector.broadcast %cst_92 : f32 to vector<8x32xf32>
    %241 = arith.addf %240, %239 : vector<8x32xf32>
    %cst_93 = arith.constant 5.000000e-01 : f32
    %242 = vector.broadcast %cst_93 : f32 to vector<8x32xf32>
    %243 = arith.mulf %242, %241 : vector<8x32xf32>
    %244 = vector.extract_strided_slice %238 {offsets = [0, 32], sizes = [8, 32], strides = [1, 1]} : vector<8x128xf32> to vector<8x32xf32>
    %cst_94 = arith.constant 1.000000e+00 : f32
    %245 = vector.broadcast %cst_94 : f32 to vector<8x32xf32>
    %246 = arith.addf %245, %244 : vector<8x32xf32>
    %cst_95 = arith.constant 5.000000e-01 : f32
    %247 = vector.broadcast %cst_95 : f32 to vector<8x32xf32>
    %248 = arith.mulf %247, %246 : vector<8x32xf32>
    %249 = vector.extract_strided_slice %238 {offsets = [0, 64], sizes = [8, 32], strides = [1, 1]} : vector<8x128xf32> to vector<8x32xf32>
    %250 = vector.extract_strided_slice %238 {offsets = [0, 96], sizes = [8, 32], strides = [1, 1]} : vector<8x128xf32> to vector<8x32xf32>
    %cst_96 = arith.constant 1.000000e+00 : f32
    %251 = vector.broadcast %cst_96 : f32 to vector<8x32xf32>
    %252 = arith.addf %251, %250 : vector<8x32xf32>
    %cst_97 = arith.constant 5.000000e-01 : f32
    %253 = vector.broadcast %cst_97 : f32 to vector<8x32xf32>
    %254 = arith.mulf %253, %252 : vector<8x32xf32>
    %255 = arith.mulf %248, %230 : vector<8x32xf32>
    %256 = arith.mulf %243, %249 : vector<8x32xf32>
    %257 = arith.addf %255, %256 : vector<8x32xf32>
    %258 = math.tanh %257 : vector<8x32xf32>
    %259 = arith.mulf %254, %258 : vector<8x32xf32>
    %cst_98 = arith.constant dense<0.000000e+00> : vector<8x128xf32>
    %260 = tpu.matmul %259, %43, %cst_98 {dimension_numbers = #tpu.dot_dimension_numbers<[1], [0], [0], [1], [0, 0, 1, 1], [], []>} : vector<8x32xf32>, vector<32x128xf32>, vector<8x128xf32> -> vector<8x128xf32>
    %261 = vector.broadcast %44 : vector<1x128xf32> to vector<8x128xf32>
    %262 = arith.addf %260, %261 : vector<8x128xf32>
    %c0_99 = arith.constant 0 : index
    %c0_100 = arith.constant 0 : index
    %263 = vector.load %arg6[%c0_99, %c0_100] : memref<32x128xf32, #tpu.memory_space<vmem>>, vector<32x128xf32>
    %c0_101 = arith.constant 0 : index
    %c0_102 = arith.constant 0 : index
    %264 = vector.load %arg8[%c0_101, %c0_102] : memref<32x16xf32, #tpu.memory_space<vmem>>, vector<32x16xf32>
    %c0_103 = arith.constant 0 : index
    %c0_104 = arith.constant 0 : index
    %265 = vector.load %arg10[%c0_103, %c0_104] : memref<1x16xf32, #tpu.memory_space<vmem>>, vector<1x16xf32>
    %cst_105 = arith.constant 0.000000e+00 : f32
    %266 = vector.broadcast %cst_105 : f32 to vector<8x32xf32>
    %cst_106 = arith.constant 0.000000e+00 : f32
    %267 = vector.broadcast %cst_106 : f32 to vector<8x32xf32>
    %cst_107 = arith.constant dense<0.000000e+00> : vector<8x128xf32>
    %268 = tpu.matmul %266, %263, %cst_107 {dimension_numbers = #tpu.dot_dimension_numbers<[1], [0], [0], [1], [0, 0, 1, 1], [], []>} : vector<8x32xf32>, vector<32x128xf32>, vector<8x128xf32> -> vector<8x128xf32>
    %269 = arith.addf %73, %268 : vector<8x128xf32>
    %270 = math.tanh %269 : vector<8x128xf32>
    %271 = vector.extract_strided_slice %270 {offsets = [0, 0], sizes = [8, 32], strides = [1, 1]} : vector<8x128xf32> to vector<8x32xf32>
    %cst_108 = arith.constant 1.000000e+00 : f32
    %272 = vector.broadcast %cst_108 : f32 to vector<8x32xf32>
    %273 = arith.addf %272, %271 : vector<8x32xf32>
    %cst_109 = arith.constant 5.000000e-01 : f32
    %274 = vector.broadcast %cst_109 : f32 to vector<8x32xf32>
    %275 = arith.mulf %274, %273 : vector<8x32xf32>
    %276 = vector.extract_strided_slice %270 {offsets = [0, 32], sizes = [8, 32], strides = [1, 1]} : vector<8x128xf32> to vector<8x32xf32>
    %cst_110 = arith.constant 1.000000e+00 : f32
    %277 = vector.broadcast %cst_110 : f32 to vector<8x32xf32>
    %278 = arith.addf %277, %276 : vector<8x32xf32>
    %cst_111 = arith.constant 5.000000e-01 : f32
    %279 = vector.broadcast %cst_111 : f32 to vector<8x32xf32>
    %280 = arith.mulf %279, %278 : vector<8x32xf32>
    %281 = vector.extract_strided_slice %270 {offsets = [0, 64], sizes = [8, 32], strides = [1, 1]} : vector<8x128xf32> to vector<8x32xf32>
    %282 = vector.extract_strided_slice %270 {offsets = [0, 96], sizes = [8, 32], strides = [1, 1]} : vector<8x128xf32> to vector<8x32xf32>
    %cst_112 = arith.constant 1.000000e+00 : f32
    %283 = vector.broadcast %cst_112 : f32 to vector<8x32xf32>
    %284 = arith.addf %283, %282 : vector<8x32xf32>
    %cst_113 = arith.constant 5.000000e-01 : f32
    %285 = vector.broadcast %cst_113 : f32 to vector<8x32xf32>
    %286 = arith.mulf %285, %284 : vector<8x32xf32>
    %287 = arith.mulf %280, %267 : vector<8x32xf32>
    %288 = arith.mulf %275, %281 : vector<8x32xf32>
    %289 = arith.addf %287, %288 : vector<8x32xf32>
    %290 = math.tanh %289 : vector<8x32xf32>
    %291 = arith.mulf %286, %290 : vector<8x32xf32>
    %cst_114 = arith.constant dense<0.000000e+00> : vector<8x16xf32>
    %292 = tpu.matmul %291, %264, %cst_114 {dimension_numbers = #tpu.dot_dimension_numbers<[1], [0], [0], [1], [0, 0, 1, 1], [], []>} : vector<8x32xf32>, vector<32x16xf32>, vector<8x16xf32> -> vector<8x16xf32>
    %293 = vector.broadcast %265 : vector<1x16xf32> to vector<8x16xf32>
    %294 = arith.addf %292, %293 : vector<8x16xf32>
    %cst_115 = arith.constant dense<0.000000e+00> : vector<8x128xf32>
    %295 = tpu.matmul %291, %263, %cst_115 {dimension_numbers = #tpu.dot_dimension_numbers<[1], [0], [0], [1], [0, 0, 1, 1], [], []>} : vector<8x32xf32>, vector<32x128xf32>, vector<8x128xf32> -> vector<8x128xf32>
    %296 = arith.addf %100, %295 : vector<8x128xf32>
    %297 = math.tanh %296 : vector<8x128xf32>
    %298 = vector.extract_strided_slice %297 {offsets = [0, 0], sizes = [8, 32], strides = [1, 1]} : vector<8x128xf32> to vector<8x32xf32>
    %cst_116 = arith.constant 1.000000e+00 : f32
    %299 = vector.broadcast %cst_116 : f32 to vector<8x32xf32>
    %300 = arith.addf %299, %298 : vector<8x32xf32>
    %cst_117 = arith.constant 5.000000e-01 : f32
    %301 = vector.broadcast %cst_117 : f32 to vector<8x32xf32>
    %302 = arith.mulf %301, %300 : vector<8x32xf32>
    %303 = vector.extract_strided_slice %297 {offsets = [0, 32], sizes = [8, 32], strides = [1, 1]} : vector<8x128xf32> to vector<8x32xf32>
    %cst_118 = arith.constant 1.000000e+00 : f32
    %304 = vector.broadcast %cst_118 : f32 to vector<8x32xf32>
    %305 = arith.addf %304, %303 : vector<8x32xf32>
    %cst_119 = arith.constant 5.000000e-01 : f32
    %306 = vector.broadcast %cst_119 : f32 to vector<8x32xf32>
    %307 = arith.mulf %306, %305 : vector<8x32xf32>
    %308 = vector.extract_strided_slice %297 {offsets = [0, 64], sizes = [8, 32], strides = [1, 1]} : vector<8x128xf32> to vector<8x32xf32>
    %309 = vector.extract_strided_slice %297 {offsets = [0, 96], sizes = [8, 32], strides = [1, 1]} : vector<8x128xf32> to vector<8x32xf32>
    %cst_120 = arith.constant 1.000000e+00 : f32
    %310 = vector.broadcast %cst_120 : f32 to vector<8x32xf32>
    %311 = arith.addf %310, %309 : vector<8x32xf32>
    %cst_121 = arith.constant 5.000000e-01 : f32
    %312 = vector.broadcast %cst_121 : f32 to vector<8x32xf32>
    %313 = arith.mulf %312, %311 : vector<8x32xf32>
    %314 = arith.mulf %307, %289 : vector<8x32xf32>
    %315 = arith.mulf %302, %308 : vector<8x32xf32>
    %316 = arith.addf %314, %315 : vector<8x32xf32>
    %317 = math.tanh %316 : vector<8x32xf32>
    %318 = arith.mulf %313, %317 : vector<8x32xf32>
    %cst_122 = arith.constant dense<0.000000e+00> : vector<8x16xf32>
    %319 = tpu.matmul %318, %264, %cst_122 {dimension_numbers = #tpu.dot_dimension_numbers<[1], [0], [0], [1], [0, 0, 1, 1], [], []>} : vector<8x32xf32>, vector<32x16xf32>, vector<8x16xf32> -> vector<8x16xf32>
    %320 = vector.broadcast %265 : vector<1x16xf32> to vector<8x16xf32>
    %321 = arith.addf %319, %320 : vector<8x16xf32>
    %cst_123 = arith.constant dense<0.000000e+00> : vector<8x128xf32>
    %322 = tpu.matmul %318, %263, %cst_123 {dimension_numbers = #tpu.dot_dimension_numbers<[1], [0], [0], [1], [0, 0, 1, 1], [], []>} : vector<8x32xf32>, vector<32x128xf32>, vector<8x128xf32> -> vector<8x128xf32>
    %323 = arith.addf %127, %322 : vector<8x128xf32>
    %324 = math.tanh %323 : vector<8x128xf32>
    %325 = vector.extract_strided_slice %324 {offsets = [0, 0], sizes = [8, 32], strides = [1, 1]} : vector<8x128xf32> to vector<8x32xf32>
    %cst_124 = arith.constant 1.000000e+00 : f32
    %326 = vector.broadcast %cst_124 : f32 to vector<8x32xf32>
    %327 = arith.addf %326, %325 : vector<8x32xf32>
    %cst_125 = arith.constant 5.000000e-01 : f32
    %328 = vector.broadcast %cst_125 : f32 to vector<8x32xf32>
    %329 = arith.mulf %328, %327 : vector<8x32xf32>
    %330 = vector.extract_strided_slice %324 {offsets = [0, 32], sizes = [8, 32], strides = [1, 1]} : vector<8x128xf32> to vector<8x32xf32>
    %cst_126 = arith.constant 1.000000e+00 : f32
    %331 = vector.broadcast %cst_126 : f32 to vector<8x32xf32>
    %332 = arith.addf %331, %330 : vector<8x32xf32>
    %cst_127 = arith.constant 5.000000e-01 : f32
    %333 = vector.broadcast %cst_127 : f32 to vector<8x32xf32>
    %334 = arith.mulf %333, %332 : vector<8x32xf32>
    %335 = vector.extract_strided_slice %324 {offsets = [0, 64], sizes = [8, 32], strides = [1, 1]} : vector<8x128xf32> to vector<8x32xf32>
    %336 = vector.extract_strided_slice %324 {offsets = [0, 96], sizes = [8, 32], strides = [1, 1]} : vector<8x128xf32> to vector<8x32xf32>
    %cst_128 = arith.constant 1.000000e+00 : f32
    %337 = vector.broadcast %cst_128 : f32 to vector<8x32xf32>
    %338 = arith.addf %337, %336 : vector<8x32xf32>
    %cst_129 = arith.constant 5.000000e-01 : f32
    %339 = vector.broadcast %cst_129 : f32 to vector<8x32xf32>
    %340 = arith.mulf %339, %338 : vector<8x32xf32>
    %341 = arith.mulf %334, %316 : vector<8x32xf32>
    %342 = arith.mulf %329, %335 : vector<8x32xf32>
    %343 = arith.addf %341, %342 : vector<8x32xf32>
    %344 = math.tanh %343 : vector<8x32xf32>
    %345 = arith.mulf %340, %344 : vector<8x32xf32>
    %cst_130 = arith.constant dense<0.000000e+00> : vector<8x16xf32>
    %346 = tpu.matmul %345, %264, %cst_130 {dimension_numbers = #tpu.dot_dimension_numbers<[1], [0], [0], [1], [0, 0, 1, 1], [], []>} : vector<8x32xf32>, vector<32x16xf32>, vector<8x16xf32> -> vector<8x16xf32>
    %347 = vector.broadcast %265 : vector<1x16xf32> to vector<8x16xf32>
    %348 = arith.addf %346, %347 : vector<8x16xf32>
    %cst_131 = arith.constant dense<0.000000e+00> : vector<8x128xf32>
    %349 = tpu.matmul %345, %263, %cst_131 {dimension_numbers = #tpu.dot_dimension_numbers<[1], [0], [0], [1], [0, 0, 1, 1], [], []>} : vector<8x32xf32>, vector<32x128xf32>, vector<8x128xf32> -> vector<8x128xf32>
    %350 = arith.addf %154, %349 : vector<8x128xf32>
    %351 = math.tanh %350 : vector<8x128xf32>
    %352 = vector.extract_strided_slice %351 {offsets = [0, 0], sizes = [8, 32], strides = [1, 1]} : vector<8x128xf32> to vector<8x32xf32>
    %cst_132 = arith.constant 1.000000e+00 : f32
    %353 = vector.broadcast %cst_132 : f32 to vector<8x32xf32>
    %354 = arith.addf %353, %352 : vector<8x32xf32>
    %cst_133 = arith.constant 5.000000e-01 : f32
    %355 = vector.broadcast %cst_133 : f32 to vector<8x32xf32>
    %356 = arith.mulf %355, %354 : vector<8x32xf32>
    %357 = vector.extract_strided_slice %351 {offsets = [0, 32], sizes = [8, 32], strides = [1, 1]} : vector<8x128xf32> to vector<8x32xf32>
    %cst_134 = arith.constant 1.000000e+00 : f32
    %358 = vector.broadcast %cst_134 : f32 to vector<8x32xf32>
    %359 = arith.addf %358, %357 : vector<8x32xf32>
    %cst_135 = arith.constant 5.000000e-01 : f32
    %360 = vector.broadcast %cst_135 : f32 to vector<8x32xf32>
    %361 = arith.mulf %360, %359 : vector<8x32xf32>
    %362 = vector.extract_strided_slice %351 {offsets = [0, 64], sizes = [8, 32], strides = [1, 1]} : vector<8x128xf32> to vector<8x32xf32>
    %363 = vector.extract_strided_slice %351 {offsets = [0, 96], sizes = [8, 32], strides = [1, 1]} : vector<8x128xf32> to vector<8x32xf32>
    %cst_136 = arith.constant 1.000000e+00 : f32
    %364 = vector.broadcast %cst_136 : f32 to vector<8x32xf32>
    %365 = arith.addf %364, %363 : vector<8x32xf32>
    %cst_137 = arith.constant 5.000000e-01 : f32
    %366 = vector.broadcast %cst_137 : f32 to vector<8x32xf32>
    %367 = arith.mulf %366, %365 : vector<8x32xf32>
    %368 = arith.mulf %361, %343 : vector<8x32xf32>
    %369 = arith.mulf %356, %362 : vector<8x32xf32>
    %370 = arith.addf %368, %369 : vector<8x32xf32>
    %371 = math.tanh %370 : vector<8x32xf32>
    %372 = arith.mulf %367, %371 : vector<8x32xf32>
    %cst_138 = arith.constant dense<0.000000e+00> : vector<8x16xf32>
    %373 = tpu.matmul %372, %264, %cst_138 {dimension_numbers = #tpu.dot_dimension_numbers<[1], [0], [0], [1], [0, 0, 1, 1], [], []>} : vector<8x32xf32>, vector<32x16xf32>, vector<8x16xf32> -> vector<8x16xf32>
    %374 = vector.broadcast %265 : vector<1x16xf32> to vector<8x16xf32>
    %375 = arith.addf %373, %374 : vector<8x16xf32>
    %cst_139 = arith.constant dense<0.000000e+00> : vector<8x128xf32>
    %376 = tpu.matmul %372, %263, %cst_139 {dimension_numbers = #tpu.dot_dimension_numbers<[1], [0], [0], [1], [0, 0, 1, 1], [], []>} : vector<8x32xf32>, vector<32x128xf32>, vector<8x128xf32> -> vector<8x128xf32>
    %377 = arith.addf %181, %376 : vector<8x128xf32>
    %378 = math.tanh %377 : vector<8x128xf32>
    %379 = vector.extract_strided_slice %378 {offsets = [0, 0], sizes = [8, 32], strides = [1, 1]} : vector<8x128xf32> to vector<8x32xf32>
    %cst_140 = arith.constant 1.000000e+00 : f32
    %380 = vector.broadcast %cst_140 : f32 to vector<8x32xf32>
    %381 = arith.addf %380, %379 : vector<8x32xf32>
    %cst_141 = arith.constant 5.000000e-01 : f32
    %382 = vector.broadcast %cst_141 : f32 to vector<8x32xf32>
    %383 = arith.mulf %382, %381 : vector<8x32xf32>
    %384 = vector.extract_strided_slice %378 {offsets = [0, 32], sizes = [8, 32], strides = [1, 1]} : vector<8x128xf32> to vector<8x32xf32>
    %cst_142 = arith.constant 1.000000e+00 : f32
    %385 = vector.broadcast %cst_142 : f32 to vector<8x32xf32>
    %386 = arith.addf %385, %384 : vector<8x32xf32>
    %cst_143 = arith.constant 5.000000e-01 : f32
    %387 = vector.broadcast %cst_143 : f32 to vector<8x32xf32>
    %388 = arith.mulf %387, %386 : vector<8x32xf32>
    %389 = vector.extract_strided_slice %378 {offsets = [0, 64], sizes = [8, 32], strides = [1, 1]} : vector<8x128xf32> to vector<8x32xf32>
    %390 = vector.extract_strided_slice %378 {offsets = [0, 96], sizes = [8, 32], strides = [1, 1]} : vector<8x128xf32> to vector<8x32xf32>
    %cst_144 = arith.constant 1.000000e+00 : f32
    %391 = vector.broadcast %cst_144 : f32 to vector<8x32xf32>
    %392 = arith.addf %391, %390 : vector<8x32xf32>
    %cst_145 = arith.constant 5.000000e-01 : f32
    %393 = vector.broadcast %cst_145 : f32 to vector<8x32xf32>
    %394 = arith.mulf %393, %392 : vector<8x32xf32>
    %395 = arith.mulf %388, %370 : vector<8x32xf32>
    %396 = arith.mulf %383, %389 : vector<8x32xf32>
    %397 = arith.addf %395, %396 : vector<8x32xf32>
    %398 = math.tanh %397 : vector<8x32xf32>
    %399 = arith.mulf %394, %398 : vector<8x32xf32>
    %cst_146 = arith.constant dense<0.000000e+00> : vector<8x16xf32>
    %400 = tpu.matmul %399, %264, %cst_146 {dimension_numbers = #tpu.dot_dimension_numbers<[1], [0], [0], [1], [0, 0, 1, 1], [], []>} : vector<8x32xf32>, vector<32x16xf32>, vector<8x16xf32> -> vector<8x16xf32>
    %401 = vector.broadcast %265 : vector<1x16xf32> to vector<8x16xf32>
    %402 = arith.addf %400, %401 : vector<8x16xf32>
    %cst_147 = arith.constant dense<0.000000e+00> : vector<8x128xf32>
    %403 = tpu.matmul %399, %263, %cst_147 {dimension_numbers = #tpu.dot_dimension_numbers<[1], [0], [0], [1], [0, 0, 1, 1], [], []>} : vector<8x32xf32>, vector<32x128xf32>, vector<8x128xf32> -> vector<8x128xf32>
    %404 = arith.addf %208, %403 : vector<8x128xf32>
    %405 = math.tanh %404 : vector<8x128xf32>
    %406 = vector.extract_strided_slice %405 {offsets = [0, 0], sizes = [8, 32], strides = [1, 1]} : vector<8x128xf32> to vector<8x32xf32>
    %cst_148 = arith.constant 1.000000e+00 : f32
    %407 = vector.broadcast %cst_148 : f32 to vector<8x32xf32>
    %408 = arith.addf %407, %406 : vector<8x32xf32>
    %cst_149 = arith.constant 5.000000e-01 : f32
    %409 = vector.broadcast %cst_149 : f32 to vector<8x32xf32>
    %410 = arith.mulf %409, %408 : vector<8x32xf32>
    %411 = vector.extract_strided_slice %405 {offsets = [0, 32], sizes = [8, 32], strides = [1, 1]} : vector<8x128xf32> to vector<8x32xf32>
    %cst_150 = arith.constant 1.000000e+00 : f32
    %412 = vector.broadcast %cst_150 : f32 to vector<8x32xf32>
    %413 = arith.addf %412, %411 : vector<8x32xf32>
    %cst_151 = arith.constant 5.000000e-01 : f32
    %414 = vector.broadcast %cst_151 : f32 to vector<8x32xf32>
    %415 = arith.mulf %414, %413 : vector<8x32xf32>
    %416 = vector.extract_strided_slice %405 {offsets = [0, 64], sizes = [8, 32], strides = [1, 1]} : vector<8x128xf32> to vector<8x32xf32>
    %417 = vector.extract_strided_slice %405 {offsets = [0, 96], sizes = [8, 32], strides = [1, 1]} : vector<8x128xf32> to vector<8x32xf32>
    %cst_152 = arith.constant 1.000000e+00 : f32
    %418 = vector.broadcast %cst_152 : f32 to vector<8x32xf32>
    %419 = arith.addf %418, %417 : vector<8x32xf32>
    %cst_153 = arith.constant 5.000000e-01 : f32
    %420 = vector.broadcast %cst_153 : f32 to vector<8x32xf32>
    %421 = arith.mulf %420, %419 : vector<8x32xf32>
    %422 = arith.mulf %415, %397 : vector<8x32xf32>
    %423 = arith.mulf %410, %416 : vector<8x32xf32>
    %424 = arith.addf %422, %423 : vector<8x32xf32>
    %425 = math.tanh %424 : vector<8x32xf32>
    %426 = arith.mulf %421, %425 : vector<8x32xf32>
    %cst_154 = arith.constant dense<0.000000e+00> : vector<8x16xf32>
    %427 = tpu.matmul %426, %264, %cst_154 {dimension_numbers = #tpu.dot_dimension_numbers<[1], [0], [0], [1], [0, 0, 1, 1], [], []>} : vector<8x32xf32>, vector<32x16xf32>, vector<8x16xf32> -> vector<8x16xf32>
    %428 = vector.broadcast %265 : vector<1x16xf32> to vector<8x16xf32>
    %429 = arith.addf %427, %428 : vector<8x16xf32>
    %cst_155 = arith.constant dense<0.000000e+00> : vector<8x128xf32>
    %430 = tpu.matmul %426, %263, %cst_155 {dimension_numbers = #tpu.dot_dimension_numbers<[1], [0], [0], [1], [0, 0, 1, 1], [], []>} : vector<8x32xf32>, vector<32x128xf32>, vector<8x128xf32> -> vector<8x128xf32>
    %431 = arith.addf %235, %430 : vector<8x128xf32>
    %432 = math.tanh %431 : vector<8x128xf32>
    %433 = vector.extract_strided_slice %432 {offsets = [0, 0], sizes = [8, 32], strides = [1, 1]} : vector<8x128xf32> to vector<8x32xf32>
    %cst_156 = arith.constant 1.000000e+00 : f32
    %434 = vector.broadcast %cst_156 : f32 to vector<8x32xf32>
    %435 = arith.addf %434, %433 : vector<8x32xf32>
    %cst_157 = arith.constant 5.000000e-01 : f32
    %436 = vector.broadcast %cst_157 : f32 to vector<8x32xf32>
    %437 = arith.mulf %436, %435 : vector<8x32xf32>
    %438 = vector.extract_strided_slice %432 {offsets = [0, 32], sizes = [8, 32], strides = [1, 1]} : vector<8x128xf32> to vector<8x32xf32>
    %cst_158 = arith.constant 1.000000e+00 : f32
    %439 = vector.broadcast %cst_158 : f32 to vector<8x32xf32>
    %440 = arith.addf %439, %438 : vector<8x32xf32>
    %cst_159 = arith.constant 5.000000e-01 : f32
    %441 = vector.broadcast %cst_159 : f32 to vector<8x32xf32>
    %442 = arith.mulf %441, %440 : vector<8x32xf32>
    %443 = vector.extract_strided_slice %432 {offsets = [0, 64], sizes = [8, 32], strides = [1, 1]} : vector<8x128xf32> to vector<8x32xf32>
    %444 = vector.extract_strided_slice %432 {offsets = [0, 96], sizes = [8, 32], strides = [1, 1]} : vector<8x128xf32> to vector<8x32xf32>
    %cst_160 = arith.constant 1.000000e+00 : f32
    %445 = vector.broadcast %cst_160 : f32 to vector<8x32xf32>
    %446 = arith.addf %445, %444 : vector<8x32xf32>
    %cst_161 = arith.constant 5.000000e-01 : f32
    %447 = vector.broadcast %cst_161 : f32 to vector<8x32xf32>
    %448 = arith.mulf %447, %446 : vector<8x32xf32>
    %449 = arith.mulf %442, %424 : vector<8x32xf32>
    %450 = arith.mulf %437, %443 : vector<8x32xf32>
    %451 = arith.addf %449, %450 : vector<8x32xf32>
    %452 = math.tanh %451 : vector<8x32xf32>
    %453 = arith.mulf %448, %452 : vector<8x32xf32>
    %cst_162 = arith.constant dense<0.000000e+00> : vector<8x16xf32>
    %454 = tpu.matmul %453, %264, %cst_162 {dimension_numbers = #tpu.dot_dimension_numbers<[1], [0], [0], [1], [0, 0, 1, 1], [], []>} : vector<8x32xf32>, vector<32x16xf32>, vector<8x16xf32> -> vector<8x16xf32>
    %455 = vector.broadcast %265 : vector<1x16xf32> to vector<8x16xf32>
    %456 = arith.addf %454, %455 : vector<8x16xf32>
    %cst_163 = arith.constant dense<0.000000e+00> : vector<8x128xf32>
    %457 = tpu.matmul %453, %263, %cst_163 {dimension_numbers = #tpu.dot_dimension_numbers<[1], [0], [0], [1], [0, 0, 1, 1], [], []>} : vector<8x32xf32>, vector<32x128xf32>, vector<8x128xf32> -> vector<8x128xf32>
    %458 = arith.addf %262, %457 : vector<8x128xf32>
    %459 = math.tanh %458 : vector<8x128xf32>
    %460 = vector.extract_strided_slice %459 {offsets = [0, 0], sizes = [8, 32], strides = [1, 1]} : vector<8x128xf32> to vector<8x32xf32>
    %cst_164 = arith.constant 1.000000e+00 : f32
    %461 = vector.broadcast %cst_164 : f32 to vector<8x32xf32>
    %462 = arith.addf %461, %460 : vector<8x32xf32>
    %cst_165 = arith.constant 5.000000e-01 : f32
    %463 = vector.broadcast %cst_165 : f32 to vector<8x32xf32>
    %464 = arith.mulf %463, %462 : vector<8x32xf32>
    %465 = vector.extract_strided_slice %459 {offsets = [0, 32], sizes = [8, 32], strides = [1, 1]} : vector<8x128xf32> to vector<8x32xf32>
    %cst_166 = arith.constant 1.000000e+00 : f32
    %466 = vector.broadcast %cst_166 : f32 to vector<8x32xf32>
    %467 = arith.addf %466, %465 : vector<8x32xf32>
    %cst_167 = arith.constant 5.000000e-01 : f32
    %468 = vector.broadcast %cst_167 : f32 to vector<8x32xf32>
    %469 = arith.mulf %468, %467 : vector<8x32xf32>
    %470 = vector.extract_strided_slice %459 {offsets = [0, 64], sizes = [8, 32], strides = [1, 1]} : vector<8x128xf32> to vector<8x32xf32>
    %471 = vector.extract_strided_slice %459 {offsets = [0, 96], sizes = [8, 32], strides = [1, 1]} : vector<8x128xf32> to vector<8x32xf32>
    %cst_168 = arith.constant 1.000000e+00 : f32
    %472 = vector.broadcast %cst_168 : f32 to vector<8x32xf32>
    %473 = arith.addf %472, %471 : vector<8x32xf32>
    %cst_169 = arith.constant 5.000000e-01 : f32
    %474 = vector.broadcast %cst_169 : f32 to vector<8x32xf32>
    %475 = arith.mulf %474, %473 : vector<8x32xf32>
    %476 = arith.mulf %469, %451 : vector<8x32xf32>
    %477 = arith.mulf %464, %470 : vector<8x32xf32>
    %478 = arith.addf %476, %477 : vector<8x32xf32>
    %479 = math.tanh %478 : vector<8x32xf32>
    %480 = arith.mulf %475, %479 : vector<8x32xf32>
    %cst_170 = arith.constant dense<0.000000e+00> : vector<8x16xf32>
    %481 = tpu.matmul %480, %264, %cst_170 {dimension_numbers = #tpu.dot_dimension_numbers<[1], [0], [0], [1], [0, 0, 1, 1], [], []>} : vector<8x32xf32>, vector<32x16xf32>, vector<8x16xf32> -> vector<8x16xf32>
    %482 = vector.broadcast %265 : vector<1x16xf32> to vector<8x16xf32>
    %483 = arith.addf %481, %482 : vector<8x16xf32>
    %c0_171 = arith.constant 0 : index
    %c0_172 = arith.constant 0 : index
    %484 = vector.load %arg9[%c0_171, %c0_172] : memref<4x16xf32, #tpu.memory_space<vmem>>, vector<4x16xf32>
    %cst_173 = arith.constant 0.000000e+00 : f32
    %485 = vector.broadcast %cst_173 : f32 to vector<8x4xf32>
    %cst_174 = arith.constant 0.000000e+00 : f32
    %486 = vector.broadcast %cst_174 : f32 to vector<8x4xf32>
    %cst_175 = arith.constant dense<0.000000e+00> : vector<8x16xf32>
    %487 = tpu.matmul %485, %484, %cst_175 {dimension_numbers = #tpu.dot_dimension_numbers<[1], [0], [0], [1], [0, 0, 1, 1], [], []>} : vector<8x4xf32>, vector<4x16xf32>, vector<8x16xf32> -> vector<8x16xf32>
    %488 = arith.addf %294, %487 : vector<8x16xf32>
    %489 = math.tanh %488 : vector<8x16xf32>
    %490 = vector.extract_strided_slice %489 {offsets = [0, 0], sizes = [8, 4], strides = [1, 1]} : vector<8x16xf32> to vector<8x4xf32>
    %cst_176 = arith.constant 1.000000e+00 : f32
    %491 = vector.broadcast %cst_176 : f32 to vector<8x4xf32>
    %492 = arith.addf %491, %490 : vector<8x4xf32>
    %cst_177 = arith.constant 5.000000e-01 : f32
    %493 = vector.broadcast %cst_177 : f32 to vector<8x4xf32>
    %494 = arith.mulf %493, %492 : vector<8x4xf32>
    %495 = vector.extract_strided_slice %489 {offsets = [0, 4], sizes = [8, 4], strides = [1, 1]} : vector<8x16xf32> to vector<8x4xf32>
    %cst_178 = arith.constant 1.000000e+00 : f32
    %496 = vector.broadcast %cst_178 : f32 to vector<8x4xf32>
    %497 = arith.addf %496, %495 : vector<8x4xf32>
    %cst_179 = arith.constant 5.000000e-01 : f32
    %498 = vector.broadcast %cst_179 : f32 to vector<8x4xf32>
    %499 = arith.mulf %498, %497 : vector<8x4xf32>
    %500 = vector.extract_strided_slice %489 {offsets = [0, 8], sizes = [8, 4], strides = [1, 1]} : vector<8x16xf32> to vector<8x4xf32>
    %501 = vector.extract_strided_slice %489 {offsets = [0, 12], sizes = [8, 4], strides = [1, 1]} : vector<8x16xf32> to vector<8x4xf32>
    %cst_180 = arith.constant 1.000000e+00 : f32
    %502 = vector.broadcast %cst_180 : f32 to vector<8x4xf32>
    %503 = arith.addf %502, %501 : vector<8x4xf32>
    %cst_181 = arith.constant 5.000000e-01 : f32
    %504 = vector.broadcast %cst_181 : f32 to vector<8x4xf32>
    %505 = arith.mulf %504, %503 : vector<8x4xf32>
    %506 = arith.mulf %499, %486 : vector<8x4xf32>
    %507 = arith.mulf %494, %500 : vector<8x4xf32>
    %508 = arith.addf %506, %507 : vector<8x4xf32>
    %509 = math.tanh %508 : vector<8x4xf32>
    %510 = arith.mulf %505, %509 : vector<8x4xf32>
    %cst_182 = arith.constant dense<0.000000e+00> : vector<8x16xf32>
    %511 = tpu.matmul %510, %484, %cst_182 {dimension_numbers = #tpu.dot_dimension_numbers<[1], [0], [0], [1], [0, 0, 1, 1], [], []>} : vector<8x4xf32>, vector<4x16xf32>, vector<8x16xf32> -> vector<8x16xf32>
    %512 = arith.addf %321, %511 : vector<8x16xf32>
    %513 = math.tanh %512 : vector<8x16xf32>
    %514 = vector.extract_strided_slice %513 {offsets = [0, 0], sizes = [8, 4], strides = [1, 1]} : vector<8x16xf32> to vector<8x4xf32>
    %cst_183 = arith.constant 1.000000e+00 : f32
    %515 = vector.broadcast %cst_183 : f32 to vector<8x4xf32>
    %516 = arith.addf %515, %514 : vector<8x4xf32>
    %cst_184 = arith.constant 5.000000e-01 : f32
    %517 = vector.broadcast %cst_184 : f32 to vector<8x4xf32>
    %518 = arith.mulf %517, %516 : vector<8x4xf32>
    %519 = vector.extract_strided_slice %513 {offsets = [0, 4], sizes = [8, 4], strides = [1, 1]} : vector<8x16xf32> to vector<8x4xf32>
    %cst_185 = arith.constant 1.000000e+00 : f32
    %520 = vector.broadcast %cst_185 : f32 to vector<8x4xf32>
    %521 = arith.addf %520, %519 : vector<8x4xf32>
    %cst_186 = arith.constant 5.000000e-01 : f32
    %522 = vector.broadcast %cst_186 : f32 to vector<8x4xf32>
    %523 = arith.mulf %522, %521 : vector<8x4xf32>
    %524 = vector.extract_strided_slice %513 {offsets = [0, 8], sizes = [8, 4], strides = [1, 1]} : vector<8x16xf32> to vector<8x4xf32>
    %525 = vector.extract_strided_slice %513 {offsets = [0, 12], sizes = [8, 4], strides = [1, 1]} : vector<8x16xf32> to vector<8x4xf32>
    %cst_187 = arith.constant 1.000000e+00 : f32
    %526 = vector.broadcast %cst_187 : f32 to vector<8x4xf32>
    %527 = arith.addf %526, %525 : vector<8x4xf32>
    %cst_188 = arith.constant 5.000000e-01 : f32
    %528 = vector.broadcast %cst_188 : f32 to vector<8x4xf32>
    %529 = arith.mulf %528, %527 : vector<8x4xf32>
    %530 = arith.mulf %523, %508 : vector<8x4xf32>
    %531 = arith.mulf %518, %524 : vector<8x4xf32>
    %532 = arith.addf %530, %531 : vector<8x4xf32>
    %533 = math.tanh %532 : vector<8x4xf32>
    %534 = arith.mulf %529, %533 : vector<8x4xf32>
    %cst_189 = arith.constant dense<0.000000e+00> : vector<8x16xf32>
    %535 = tpu.matmul %534, %484, %cst_189 {dimension_numbers = #tpu.dot_dimension_numbers<[1], [0], [0], [1], [0, 0, 1, 1], [], []>} : vector<8x4xf32>, vector<4x16xf32>, vector<8x16xf32> -> vector<8x16xf32>
    %536 = arith.addf %348, %535 : vector<8x16xf32>
    %537 = math.tanh %536 : vector<8x16xf32>
    %538 = vector.extract_strided_slice %537 {offsets = [0, 0], sizes = [8, 4], strides = [1, 1]} : vector<8x16xf32> to vector<8x4xf32>
    %cst_190 = arith.constant 1.000000e+00 : f32
    %539 = vector.broadcast %cst_190 : f32 to vector<8x4xf32>
    %540 = arith.addf %539, %538 : vector<8x4xf32>
    %cst_191 = arith.constant 5.000000e-01 : f32
    %541 = vector.broadcast %cst_191 : f32 to vector<8x4xf32>
    %542 = arith.mulf %541, %540 : vector<8x4xf32>
    %543 = vector.extract_strided_slice %537 {offsets = [0, 4], sizes = [8, 4], strides = [1, 1]} : vector<8x16xf32> to vector<8x4xf32>
    %cst_192 = arith.constant 1.000000e+00 : f32
    %544 = vector.broadcast %cst_192 : f32 to vector<8x4xf32>
    %545 = arith.addf %544, %543 : vector<8x4xf32>
    %cst_193 = arith.constant 5.000000e-01 : f32
    %546 = vector.broadcast %cst_193 : f32 to vector<8x4xf32>
    %547 = arith.mulf %546, %545 : vector<8x4xf32>
    %548 = vector.extract_strided_slice %537 {offsets = [0, 8], sizes = [8, 4], strides = [1, 1]} : vector<8x16xf32> to vector<8x4xf32>
    %549 = vector.extract_strided_slice %537 {offsets = [0, 12], sizes = [8, 4], strides = [1, 1]} : vector<8x16xf32> to vector<8x4xf32>
    %cst_194 = arith.constant 1.000000e+00 : f32
    %550 = vector.broadcast %cst_194 : f32 to vector<8x4xf32>
    %551 = arith.addf %550, %549 : vector<8x4xf32>
    %cst_195 = arith.constant 5.000000e-01 : f32
    %552 = vector.broadcast %cst_195 : f32 to vector<8x4xf32>
    %553 = arith.mulf %552, %551 : vector<8x4xf32>
    %554 = arith.mulf %547, %532 : vector<8x4xf32>
    %555 = arith.mulf %542, %548 : vector<8x4xf32>
    %556 = arith.addf %554, %555 : vector<8x4xf32>
    %557 = math.tanh %556 : vector<8x4xf32>
    %558 = arith.mulf %553, %557 : vector<8x4xf32>
    %cst_196 = arith.constant dense<0.000000e+00> : vector<8x16xf32>
    %559 = tpu.matmul %558, %484, %cst_196 {dimension_numbers = #tpu.dot_dimension_numbers<[1], [0], [0], [1], [0, 0, 1, 1], [], []>} : vector<8x4xf32>, vector<4x16xf32>, vector<8x16xf32> -> vector<8x16xf32>
    %560 = arith.addf %375, %559 : vector<8x16xf32>
    %561 = math.tanh %560 : vector<8x16xf32>
    %562 = vector.extract_strided_slice %561 {offsets = [0, 0], sizes = [8, 4], strides = [1, 1]} : vector<8x16xf32> to vector<8x4xf32>
    %cst_197 = arith.constant 1.000000e+00 : f32
    %563 = vector.broadcast %cst_197 : f32 to vector<8x4xf32>
    %564 = arith.addf %563, %562 : vector<8x4xf32>
    %cst_198 = arith.constant 5.000000e-01 : f32
    %565 = vector.broadcast %cst_198 : f32 to vector<8x4xf32>
    %566 = arith.mulf %565, %564 : vector<8x4xf32>
    %567 = vector.extract_strided_slice %561 {offsets = [0, 4], sizes = [8, 4], strides = [1, 1]} : vector<8x16xf32> to vector<8x4xf32>
    %cst_199 = arith.constant 1.000000e+00 : f32
    %568 = vector.broadcast %cst_199 : f32 to vector<8x4xf32>
    %569 = arith.addf %568, %567 : vector<8x4xf32>
    %cst_200 = arith.constant 5.000000e-01 : f32
    %570 = vector.broadcast %cst_200 : f32 to vector<8x4xf32>
    %571 = arith.mulf %570, %569 : vector<8x4xf32>
    %572 = vector.extract_strided_slice %561 {offsets = [0, 8], sizes = [8, 4], strides = [1, 1]} : vector<8x16xf32> to vector<8x4xf32>
    %573 = vector.extract_strided_slice %561 {offsets = [0, 12], sizes = [8, 4], strides = [1, 1]} : vector<8x16xf32> to vector<8x4xf32>
    %cst_201 = arith.constant 1.000000e+00 : f32
    %574 = vector.broadcast %cst_201 : f32 to vector<8x4xf32>
    %575 = arith.addf %574, %573 : vector<8x4xf32>
    %cst_202 = arith.constant 5.000000e-01 : f32
    %576 = vector.broadcast %cst_202 : f32 to vector<8x4xf32>
    %577 = arith.mulf %576, %575 : vector<8x4xf32>
    %578 = arith.mulf %571, %556 : vector<8x4xf32>
    %579 = arith.mulf %566, %572 : vector<8x4xf32>
    %580 = arith.addf %578, %579 : vector<8x4xf32>
    %581 = math.tanh %580 : vector<8x4xf32>
    %582 = arith.mulf %577, %581 : vector<8x4xf32>
    %cst_203 = arith.constant dense<0.000000e+00> : vector<8x16xf32>
    %583 = tpu.matmul %582, %484, %cst_203 {dimension_numbers = #tpu.dot_dimension_numbers<[1], [0], [0], [1], [0, 0, 1, 1], [], []>} : vector<8x4xf32>, vector<4x16xf32>, vector<8x16xf32> -> vector<8x16xf32>
    %584 = arith.addf %402, %583 : vector<8x16xf32>
    %585 = math.tanh %584 : vector<8x16xf32>
    %586 = vector.extract_strided_slice %585 {offsets = [0, 0], sizes = [8, 4], strides = [1, 1]} : vector<8x16xf32> to vector<8x4xf32>
    %cst_204 = arith.constant 1.000000e+00 : f32
    %587 = vector.broadcast %cst_204 : f32 to vector<8x4xf32>
    %588 = arith.addf %587, %586 : vector<8x4xf32>
    %cst_205 = arith.constant 5.000000e-01 : f32
    %589 = vector.broadcast %cst_205 : f32 to vector<8x4xf32>
    %590 = arith.mulf %589, %588 : vector<8x4xf32>
    %591 = vector.extract_strided_slice %585 {offsets = [0, 4], sizes = [8, 4], strides = [1, 1]} : vector<8x16xf32> to vector<8x4xf32>
    %cst_206 = arith.constant 1.000000e+00 : f32
    %592 = vector.broadcast %cst_206 : f32 to vector<8x4xf32>
    %593 = arith.addf %592, %591 : vector<8x4xf32>
    %cst_207 = arith.constant 5.000000e-01 : f32
    %594 = vector.broadcast %cst_207 : f32 to vector<8x4xf32>
    %595 = arith.mulf %594, %593 : vector<8x4xf32>
    %596 = vector.extract_strided_slice %585 {offsets = [0, 8], sizes = [8, 4], strides = [1, 1]} : vector<8x16xf32> to vector<8x4xf32>
    %597 = vector.extract_strided_slice %585 {offsets = [0, 12], sizes = [8, 4], strides = [1, 1]} : vector<8x16xf32> to vector<8x4xf32>
    %cst_208 = arith.constant 1.000000e+00 : f32
    %598 = vector.broadcast %cst_208 : f32 to vector<8x4xf32>
    %599 = arith.addf %598, %597 : vector<8x4xf32>
    %cst_209 = arith.constant 5.000000e-01 : f32
    %600 = vector.broadcast %cst_209 : f32 to vector<8x4xf32>
    %601 = arith.mulf %600, %599 : vector<8x4xf32>
    %602 = arith.mulf %595, %580 : vector<8x4xf32>
    %603 = arith.mulf %590, %596 : vector<8x4xf32>
    %604 = arith.addf %602, %603 : vector<8x4xf32>
    %605 = math.tanh %604 : vector<8x4xf32>
    %606 = arith.mulf %601, %605 : vector<8x4xf32>
    %cst_210 = arith.constant dense<0.000000e+00> : vector<8x16xf32>
    %607 = tpu.matmul %606, %484, %cst_210 {dimension_numbers = #tpu.dot_dimension_numbers<[1], [0], [0], [1], [0, 0, 1, 1], [], []>} : vector<8x4xf32>, vector<4x16xf32>, vector<8x16xf32> -> vector<8x16xf32>
    %608 = arith.addf %429, %607 : vector<8x16xf32>
    %609 = math.tanh %608 : vector<8x16xf32>
    %610 = vector.extract_strided_slice %609 {offsets = [0, 0], sizes = [8, 4], strides = [1, 1]} : vector<8x16xf32> to vector<8x4xf32>
    %cst_211 = arith.constant 1.000000e+00 : f32
    %611 = vector.broadcast %cst_211 : f32 to vector<8x4xf32>
    %612 = arith.addf %611, %610 : vector<8x4xf32>
    %cst_212 = arith.constant 5.000000e-01 : f32
    %613 = vector.broadcast %cst_212 : f32 to vector<8x4xf32>
    %614 = arith.mulf %613, %612 : vector<8x4xf32>
    %615 = vector.extract_strided_slice %609 {offsets = [0, 4], sizes = [8, 4], strides = [1, 1]} : vector<8x16xf32> to vector<8x4xf32>
    %cst_213 = arith.constant 1.000000e+00 : f32
    %616 = vector.broadcast %cst_213 : f32 to vector<8x4xf32>
    %617 = arith.addf %616, %615 : vector<8x4xf32>
    %cst_214 = arith.constant 5.000000e-01 : f32
    %618 = vector.broadcast %cst_214 : f32 to vector<8x4xf32>
    %619 = arith.mulf %618, %617 : vector<8x4xf32>
    %620 = vector.extract_strided_slice %609 {offsets = [0, 8], sizes = [8, 4], strides = [1, 1]} : vector<8x16xf32> to vector<8x4xf32>
    %621 = vector.extract_strided_slice %609 {offsets = [0, 12], sizes = [8, 4], strides = [1, 1]} : vector<8x16xf32> to vector<8x4xf32>
    %cst_215 = arith.constant 1.000000e+00 : f32
    %622 = vector.broadcast %cst_215 : f32 to vector<8x4xf32>
    %623 = arith.addf %622, %621 : vector<8x4xf32>
    %cst_216 = arith.constant 5.000000e-01 : f32
    %624 = vector.broadcast %cst_216 : f32 to vector<8x4xf32>
    %625 = arith.mulf %624, %623 : vector<8x4xf32>
    %626 = arith.mulf %619, %604 : vector<8x4xf32>
    %627 = arith.mulf %614, %620 : vector<8x4xf32>
    %628 = arith.addf %626, %627 : vector<8x4xf32>
    %629 = math.tanh %628 : vector<8x4xf32>
    %630 = arith.mulf %625, %629 : vector<8x4xf32>
    %cst_217 = arith.constant dense<0.000000e+00> : vector<8x16xf32>
    %631 = tpu.matmul %630, %484, %cst_217 {dimension_numbers = #tpu.dot_dimension_numbers<[1], [0], [0], [1], [0, 0, 1, 1], [], []>} : vector<8x4xf32>, vector<4x16xf32>, vector<8x16xf32> -> vector<8x16xf32>
    %632 = arith.addf %456, %631 : vector<8x16xf32>
    %633 = math.tanh %632 : vector<8x16xf32>
    %634 = vector.extract_strided_slice %633 {offsets = [0, 0], sizes = [8, 4], strides = [1, 1]} : vector<8x16xf32> to vector<8x4xf32>
    %cst_218 = arith.constant 1.000000e+00 : f32
    %635 = vector.broadcast %cst_218 : f32 to vector<8x4xf32>
    %636 = arith.addf %635, %634 : vector<8x4xf32>
    %cst_219 = arith.constant 5.000000e-01 : f32
    %637 = vector.broadcast %cst_219 : f32 to vector<8x4xf32>
    %638 = arith.mulf %637, %636 : vector<8x4xf32>
    %639 = vector.extract_strided_slice %633 {offsets = [0, 4], sizes = [8, 4], strides = [1, 1]} : vector<8x16xf32> to vector<8x4xf32>
    %cst_220 = arith.constant 1.000000e+00 : f32
    %640 = vector.broadcast %cst_220 : f32 to vector<8x4xf32>
    %641 = arith.addf %640, %639 : vector<8x4xf32>
    %cst_221 = arith.constant 5.000000e-01 : f32
    %642 = vector.broadcast %cst_221 : f32 to vector<8x4xf32>
    %643 = arith.mulf %642, %641 : vector<8x4xf32>
    %644 = vector.extract_strided_slice %633 {offsets = [0, 8], sizes = [8, 4], strides = [1, 1]} : vector<8x16xf32> to vector<8x4xf32>
    %645 = vector.extract_strided_slice %633 {offsets = [0, 12], sizes = [8, 4], strides = [1, 1]} : vector<8x16xf32> to vector<8x4xf32>
    %cst_222 = arith.constant 1.000000e+00 : f32
    %646 = vector.broadcast %cst_222 : f32 to vector<8x4xf32>
    %647 = arith.addf %646, %645 : vector<8x4xf32>
    %cst_223 = arith.constant 5.000000e-01 : f32
    %648 = vector.broadcast %cst_223 : f32 to vector<8x4xf32>
    %649 = arith.mulf %648, %647 : vector<8x4xf32>
    %650 = arith.mulf %643, %628 : vector<8x4xf32>
    %651 = arith.mulf %638, %644 : vector<8x4xf32>
    %652 = arith.addf %650, %651 : vector<8x4xf32>
    %653 = math.tanh %652 : vector<8x4xf32>
    %654 = arith.mulf %649, %653 : vector<8x4xf32>
    %cst_224 = arith.constant dense<0.000000e+00> : vector<8x16xf32>
    %655 = tpu.matmul %654, %484, %cst_224 {dimension_numbers = #tpu.dot_dimension_numbers<[1], [0], [0], [1], [0, 0, 1, 1], [], []>} : vector<8x4xf32>, vector<4x16xf32>, vector<8x16xf32> -> vector<8x16xf32>
    %656 = arith.addf %483, %655 : vector<8x16xf32>
    %657 = math.tanh %656 : vector<8x16xf32>
    %658 = vector.extract_strided_slice %657 {offsets = [0, 0], sizes = [8, 4], strides = [1, 1]} : vector<8x16xf32> to vector<8x4xf32>
    %cst_225 = arith.constant 1.000000e+00 : f32
    %659 = vector.broadcast %cst_225 : f32 to vector<8x4xf32>
    %660 = arith.addf %659, %658 : vector<8x4xf32>
    %cst_226 = arith.constant 5.000000e-01 : f32
    %661 = vector.broadcast %cst_226 : f32 to vector<8x4xf32>
    %662 = arith.mulf %661, %660 : vector<8x4xf32>
    %663 = vector.extract_strided_slice %657 {offsets = [0, 4], sizes = [8, 4], strides = [1, 1]} : vector<8x16xf32> to vector<8x4xf32>
    %cst_227 = arith.constant 1.000000e+00 : f32
    %664 = vector.broadcast %cst_227 : f32 to vector<8x4xf32>
    %665 = arith.addf %664, %663 : vector<8x4xf32>
    %cst_228 = arith.constant 5.000000e-01 : f32
    %666 = vector.broadcast %cst_228 : f32 to vector<8x4xf32>
    %667 = arith.mulf %666, %665 : vector<8x4xf32>
    %668 = vector.extract_strided_slice %657 {offsets = [0, 8], sizes = [8, 4], strides = [1, 1]} : vector<8x16xf32> to vector<8x4xf32>
    %669 = vector.extract_strided_slice %657 {offsets = [0, 12], sizes = [8, 4], strides = [1, 1]} : vector<8x16xf32> to vector<8x4xf32>
    %cst_229 = arith.constant 1.000000e+00 : f32
    %670 = vector.broadcast %cst_229 : f32 to vector<8x4xf32>
    %671 = arith.addf %670, %669 : vector<8x4xf32>
    %cst_230 = arith.constant 5.000000e-01 : f32
    %672 = vector.broadcast %cst_230 : f32 to vector<8x4xf32>
    %673 = arith.mulf %672, %671 : vector<8x4xf32>
    %674 = arith.mulf %667, %652 : vector<8x4xf32>
    %675 = arith.mulf %662, %668 : vector<8x4xf32>
    %676 = arith.addf %674, %675 : vector<8x4xf32>
    %677 = math.tanh %676 : vector<8x4xf32>
    %678 = arith.mulf %673, %677 : vector<8x4xf32>
    %c0_231 = arith.constant 0 : index
    %c0_232 = arith.constant 0 : index
    %679 = vector.load %arg11[%c0_231, %c0_232] : memref<8x4xf32, #tpu.memory_space<vmem>>, vector<8x4xf32>
    tpu.vector_store %arg11[%c0_231, %c0_232], %678 {strides = array<i32>} : memref<8x4xf32, #tpu.memory_space<vmem>>, vector<8x4xf32>,
    return
  }
  func.func @transform_0(%arg0: i32) -> (i32, i32, i32) {
    %c0_i32 = arith.constant 0 : i32
    %c0_i32_0 = arith.constant 0 : i32
    %c0_i32_1 = arith.constant 0 : i32
    return %c0_i32, %arg0, %c0_i32_0 : i32, i32, i32
  }
  func.func @transform_1(%arg0: i32) -> (i32, i32) {
    %c0_i32 = arith.constant 0 : i32
    %c0_i32_0 = arith.constant 0 : i32
    %c0_i32_1 = arith.constant 0 : i32
    return %c0_i32, %c0_i32_0 : i32, i32
  }
  func.func @transform_2(%arg0: i32) -> (i32, i32) {
    %c0_i32 = arith.constant 0 : i32
    %c0_i32_0 = arith.constant 0 : i32
    %c0_i32_1 = arith.constant 0 : i32
    return %c0_i32, %c0_i32_0 : i32, i32
  }
  func.func @transform_3(%arg0: i32) -> (i32, i32) {
    %c0_i32 = arith.constant 0 : i32
    %c0_i32_0 = arith.constant 0 : i32
    %c0_i32_1 = arith.constant 0 : i32
    return %c0_i32, %c0_i32_0 : i32, i32
  }
  func.func @transform_4(%arg0: i32) -> (i32, i32) {
    %c0_i32 = arith.constant 0 : i32
    %c0_i32_0 = arith.constant 0 : i32
    %c0_i32_1 = arith.constant 0 : i32
    return %c0_i32, %c0_i32_0 : i32, i32
  }
  func.func @transform_5(%arg0: i32) -> (i32, i32) {
    %c0_i32 = arith.constant 0 : i32
    %c0_i32_0 = arith.constant 0 : i32
    %c0_i32_1 = arith.constant 0 : i32
    return %c0_i32, %c0_i32_0 : i32, i32
  }
  func.func @transform_6(%arg0: i32) -> (i32, i32) {
    %c0_i32 = arith.constant 0 : i32
    %c0_i32_0 = arith.constant 0 : i32
    %c0_i32_1 = arith.constant 0 : i32
    return %c0_i32, %c0_i32_0 : i32, i32
  }
  func.func @transform_7(%arg0: i32) -> (i32, i32) {
    %c0_i32 = arith.constant 0 : i32
    %c0_i32_0 = arith.constant 0 : i32
    %c0_i32_1 = arith.constant 0 : i32
    return %c0_i32, %c0_i32_0 : i32, i32
  }
  func.func @transform_8(%arg0: i32) -> (i32, i32) {
    %c0_i32 = arith.constant 0 : i32
    %c0_i32_0 = arith.constant 0 : i32
    %c0_i32_1 = arith.constant 0 : i32
    return %c0_i32, %c0_i32_0 : i32, i32
  }
  func.func @transform_9(%arg0: i32) -> (i32, i32) {
    %c0_i32 = arith.constant 0 : i32
    %c0_i32_0 = arith.constant 0 : i32
    %c0_i32_1 = arith.constant 0 : i32
    return %c0_i32, %c0_i32_0 : i32, i32
  }
  func.func @transform_10(%arg0: i32) -> (i32, i32) {
    %c0_i32 = arith.constant 0 : i32
    %c0_i32_0 = arith.constant 0 : i32
    return %arg0, %c0_i32 : i32, i32
  }
}

</mosaic_0001>

<llo_original>
// kernel: tpu_custom_call.1
$region0: #{tpu_custom_call.1}
  #allocation0 [shape = 'u32[]', space=smem, size = 0x4, offset = 0x4, fixed_abs, tag = 'smem constant byte address 0x4 - core index']
  #allocation1 [shape = 'u32[72,128]{1,0:T(1,128)}', space=vmem, size = 0x9000, scoped, tag = 'internal scratch']
  %s0 = inlined_call_operand.vmem [shape: f32[8,8,4], index: 0, kind: input, shape index: {}]
  %s1 = inlined_call_operand.vmem [shape: f32[4,128], index: 1, kind: input, shape index: {}]
  %s2 = inlined_call_operand.vmem [shape: f32[32,128], index: 2, kind: input, shape index: {}]
  %s3 = inlined_call_operand.vmem [shape: f32[1,128], index: 3, kind: input, shape index: {}]
  %s4 = inlined_call_operand.vmem [shape: f32[32,128], index: 4, kind: input, shape index: {}]
  %s5 = inlined_call_operand.vmem [shape: f32[32,128], index: 5, kind: input, shape index: {}]
  %s6 = inlined_call_operand.vmem [shape: f32[1,128], index: 6, kind: input, shape index: {}]
  %s7 = inlined_call_operand.vmem [shape: f32[32,16], index: 7, kind: input, shape index: {}]
  %s8 = inlined_call_operand.vmem [shape: f32[4,16], index: 8, kind: input, shape index: {}]
  %s9 = inlined_call_operand.vmem [shape: f32[1,16], index: 9, kind: input, shape index: {}]
  %s10 = inlined_call_operand.vmem [shape: f32[8,4], index: 10, kind: output, shape index: {}]
  %s11 = sld [smem:[#allocation0]]
  $region50: #{tpu_custom_call.1} parent=0
    _
  %s13 = ssub.s32 1, %s11
  %s14 = scalar_select 0, %s13, %s11
  // Predicated region
  $region2: #{tpu_custom_call.1} parent=0 // pred_check
    _
  $region3: #{tpu_custom_call.1} parent=0 // pred_check_branch
    %16 = sbr.rel (0) target = $region5
  $region4: #{tpu_custom_call.1} parent=0 // pred_region
    _
  $region5: #{tpu_custom_call.1} parent=0 // pred_fallthru
    _
  // Predicated region
  $region6: #{tpu_custom_call.1} parent=0 // pred_check
    _
  $region7: #{tpu_custom_call.1} parent=0 // pred_check_branch
    %18 = sbr.rel (0) target = $region9
  $region8: #{tpu_custom_call.1} parent=0 // pred_region
    _
  $region9: #{tpu_custom_call.1} parent=0 // pred_fallthru
    _
  // Predicated region
  $region10: #{tpu_custom_call.1} parent=0 // pred_check
    _
  $region11: #{tpu_custom_call.1} parent=0 // pred_check_branch
    %20 = sbr.rel (0) target = $region13
  $region12: #{tpu_custom_call.1} parent=0 // pred_region
    _
  $region13: #{tpu_custom_call.1} parent=0 // pred_fallthru
    _
  // Predicated region
  $region14: #{tpu_custom_call.1} parent=0 // pred_check
    _
  $region15: #{tpu_custom_call.1} parent=0 // pred_check_branch
    %22 = sbr.rel (0) target = $region17
  $region16: #{tpu_custom_call.1} parent=0 // pred_region
    _
  $region17: #{tpu_custom_call.1} parent=0 // pred_fallthru
    _
  // Predicated region
  $region18: #{tpu_custom_call.1} parent=0 // pred_check
    _
  $region19: #{tpu_custom_call.1} parent=0 // pred_check_branch
    %24 = sbr.rel (0) target = $region21
  $region20: #{tpu_custom_call.1} parent=0 // pred_region
    _
  $region21: #{tpu_custom_call.1} parent=0 // pred_fallthru
    _
  // Predicated region
  $region22: #{tpu_custom_call.1} parent=0 // pred_check
    _
  $region23: #{tpu_custom_call.1} parent=0 // pred_check_branch
    %26 = sbr.rel (0) target = $region25
  $region24: #{tpu_custom_call.1} parent=0 // pred_region
    _
  $region25: #{tpu_custom_call.1} parent=0 // pred_fallthru
    _
  // Predicated region
  $region26: #{tpu_custom_call.1} parent=0 // pred_check
    _
  $region27: #{tpu_custom_call.1} parent=0 // pred_check_branch
    %28 = sbr.rel (0) target = $region29
  $region28: #{tpu_custom_call.1} parent=0 // pred_region
    _
  $region29: #{tpu_custom_call.1} parent=0 // pred_fallthru
    _
  // Predicated region
  $region30: #{tpu_custom_call.1} parent=0 // pred_check
    _
  $region31: #{tpu_custom_call.1} parent=0 // pred_check_branch
    %30 = sbr.rel (0) target = $region33
  $region32: #{tpu_custom_call.1} parent=0 // pred_region
    _
  $region33: #{tpu_custom_call.1} parent=0 // pred_fallthru
    _
  // Predicated region
  $region34: #{tpu_custom_call.1} parent=0 // pred_check
    _
  $region35: #{tpu_custom_call.1} parent=0 // pred_check_branch
    %32 = sbr.rel (0) target = $region37
  $region36: #{tpu_custom_call.1} parent=0 // pred_region
    _
  $region37: #{tpu_custom_call.1} parent=0 // pred_fallthru
    _
  // Predicated region
  $region38: #{tpu_custom_call.1} parent=0 // pred_check
    _
  $region39: #{tpu_custom_call.1} parent=0 // pred_check_branch
    %34 = sbr.rel (0) target = $region41
  $region40: #{tpu_custom_call.1} parent=0 // pred_region
    _
  $region41: #{tpu_custom_call.1} parent=0 // pred_fallthru
    _
  %v35 = vld [vmem:[%s1] sm:$0xf]
  %v36 = vld [vmem:[%s3] sm:$0x1]
  %v37 = vld [vmem:[%s0] sm:$0xff]
  %v39 = vperm.slane %v36, 0
  %vm41 = vcmask 31744
  %v43 = vsel %vm41, %v37, 0
  %vm45 = vcmask 1043456
  %v47 = vsel %vm45, %v35, 0
  %49 = vmatpush.msra.mxu0 0.0
  %50 = vmatpush.msra.mxu0 0.0
  %51 = vmatpush.msra.mxu0 0.0
  %52 = vmatpush.msra.mxu0 0.0
  %53 = vmatpush.msra.mxu0 0.0
  %54 = vmatpush.msra.mxu0 0.0
  %55 = vmatpush.msra.mxu0 0.0
  %56 = vmatpush.msra.mxu0 0.0
  %57 = vmatpush.msra.mxu0 0.0
  %58 = vmatpush.msra.mxu0 0.0
  %59 = vmatpush.msra.mxu0 0.0
  %60 = vmatpush.msra.mxu0 0.0
  %61 = vmatpush.msra.mxu0 0.0
  %62 = vmatpush.msra.mxu0 0.0
  %63 = vmatpush.msra.mxu0 0.0
  %64 = vmatpush.msra.mxu0 %v47
  %65 = vmatmul.f32.gmra.mxu0 %v43
  %v66 = vpop.f32.mrf.mxu0
  %v67 = vadd.f32 %v39, %v66
  %68 = vdwg.mxu0
  %s69 = scalar_lea.vmem %s0, 8
  %v70 = vld [vmem:[%s69] sm:$0xff]
  %v72 = vsel %vm41, %v70, 0
  %74 = vmatpush.msra.mxu0 0.0
  %75 = vmatpush.msra.mxu0 0.0
  %76 = vmatpush.msra.mxu0 0.0
  %77 = vmatpush.msra.mxu0 0.0
  %78 = vmatpush.msra.mxu0 0.0
  %79 = vmatpush.msra.mxu0 0.0
  %80 = vmatpush.msra.mxu0 0.0
  %81 = vmatpush.msra.mxu0 0.0
  %82 = vmatpush.msra.mxu0 0.0
  %83 = vmatpush.msra.mxu0 0.0
  %84 = vmatpush.msra.mxu0 0.0
  %85 = vmatpush.msra.mxu0 0.0
  %86 = vmatpush.msra.mxu0 0.0
  %87 = vmatpush.msra.mxu0 0.0
  %88 = vmatpush.msra.mxu0 0.0
  %89 = vmatpush.msra.mxu0 %v47
  %90 = vmatmul.f32.gmra.mxu0 %v72
  %v91 = vpop.f32.mrf.mxu0
  %v92 = vadd.f32 %v39, %v91
  %93 = vdwg.mxu0
  %s94 = scalar_lea.vmem %s0, 16
  %v95 = vld [vmem:[%s94] sm:$0xff]
  %v97 = vsel %vm41, %v95, 0
  %99 = vmatpush.msra.mxu0 0.0
  %100 = vmatpush.msra.mxu0 0.0
  %101 = vmatpush.msra.mxu0 0.0
  %102 = vmatpush.msra.mxu0 0.0
  %103 = vmatpush.msra.mxu0 0.0
  %104 = vmatpush.msra.mxu0 0.0
  %105 = vmatpush.msra.mxu0 0.0
  %106 = vmatpush.msra.mxu0 0.0
  %107 = vmatpush.msra.mxu0 0.0
  %108 = vmatpush.msra.mxu0 0.0
  %109 = vmatpush.msra.mxu0 0.0
  %110 = vmatpush.msra.mxu0 0.0
  %111 = vmatpush.msra.mxu0 0.0
  %112 = vmatpush.msra.mxu0 0.0
  %113 = vmatpush.msra.mxu0 0.0
  %114 = vmatpush.msra.mxu0 %v47
  %115 = vmatmul.f32.gmra.mxu0 %v97
  %v116 = vpop.f32.mrf.mxu0
  %v117 = vadd.f32 %v39, %v116
  %118 = vdwg.mxu0
  %s119 = scalar_lea.vmem %s0, 24
  %v120 = vld [vmem:[%s119] sm:$0xff]
  %v122 = vsel %vm41, %v120, 0
  %124 = vmatpush.msra.mxu0 0.0
  %125 = vmatpush.msra.mxu0 0.0
  %126 = vmatpush.msra.mxu0 0.0
  %127 = vmatpush.msra.mxu0 0.0
  %128 = vmatpush.msra.mxu0 0.0
  %129 = vmatpush.msra.mxu0 0.0
  %130 = vmatpush.msra.mxu0 0.0
  %131 = vmatpush.msra.mxu0 0.0
  %132 = vmatpush.msra.mxu0 0.0
  %133 = vmatpush.msra.mxu0 0.0
  %134 = vmatpush.msra.mxu0 0.0
  %135 = vmatpush.msra.mxu0 0.0
  %136 = vmatpush.msra.mxu0 0.0
  %137 = vmatpush.msra.mxu0 0.0
  %138 = vmatpush.msra.mxu0 0.0
  %139 = vmatpush.msra.mxu0 %v47
  %140 = vmatmul.f32.gmra.mxu0 %v122
  %v141 = vpop.f32.mrf.mxu0
  %v142 = vadd.f32 %v39, %v141
  %143 = vdwg.mxu0
  %s144 = scalar_lea.vmem %s0, 32
  %v145 = vld [vmem:[%s144] sm:$0xff]
  %v147 = vsel %vm41, %v145, 0
  %149 = vmatpush.msra.mxu0 0.0
  %150 = vmatpush.msra.mxu0 0.0
  %151 = vmatpush.msra.mxu0 0.0
  %152 = vmatpush.msra.mxu0 0.0
  %153 = vmatpush.msra.mxu0 0.0
  %154 = vmatpush.msra.mxu0 0.0
  %155 = vmatpush.msra.mxu0 0.0
  %156 = vmatpush.msra.mxu0 0.0
  %157 = vmatpush.msra.mxu0 0.0
  %158 = vmatpush.msra.mxu0 0.0
  %159 = vmatpush.msra.mxu0 0.0
  %160 = vmatpush.msra.mxu0 0.0
  %161 = vmatpush.msra.mxu0 0.0
  %162 = vmatpush.msra.mxu0 0.0
  %163 = vmatpush.msra.mxu0 0.0
  %164 = vmatpush.msra.mxu0 %v47
  %165 = vmatmul.f32.gmra.mxu0 %v147
  %v166 = vpop.f32.mrf.mxu0
  %v167 = vadd.f32 %v39, %v166
  %168 = vdwg.mxu0
  %s169 = scalar_lea.vmem %s0, 40
  %v170 = vld [vmem:[%s169] sm:$0xff]
  %v172 = vsel %vm41, %v170, 0
  %174 = vmatpush.msra.mxu0 0.0
  %175 = vmatpush.msra.mxu0 0.0
  %176 = vmatpush.msra.mxu0 0.0
  %177 = vmatpush.msra.mxu0 0.0
  %178 = vmatpush.msra.mxu0 0.0
  %179 = vmatpush.msra.mxu0 0.0
  %180 = vmatpush.msra.mxu0 0.0
  %181 = vmatpush.msra.mxu0 0.0
  %182 = vmatpush.msra.mxu0 0.0
  %183 = vmatpush.msra.mxu0 0.0
  %184 = vmatpush.msra.mxu0 0.0
  %185 = vmatpush.msra.mxu0 0.0
  %186 = vmatpush.msra.mxu0 0.0
  %187 = vmatpush.msra.mxu0 0.0
  %188 = vmatpush.msra.mxu0 0.0
  %189 = vmatpush.msra.mxu0 %v47
  %190 = vmatmul.f32.gmra.mxu0 %v172
  %v191 = vpop.f32.mrf.mxu0
  %v192 = vadd.f32 %v39, %v191
  %193 = vdwg.mxu0
  %s194 = scalar_lea.vmem %s0, 48
  %v195 = vld [vmem:[%s194] sm:$0xff]
  %v197 = vsel %vm41, %v195, 0
  %199 = vmatpush.msra.mxu0 0.0
  %200 = vmatpush.msra.mxu0 0.0
  %201 = vmatpush.msra.mxu0 0.0
  %202 = vmatpush.msra.mxu0 0.0
  %203 = vmatpush.msra.mxu0 0.0
  %204 = vmatpush.msra.mxu0 0.0
  %205 = vmatpush.msra.mxu0 0.0
  %206 = vmatpush.msra.mxu0 0.0
  %207 = vmatpush.msra.mxu0 0.0
  %208 = vmatpush.msra.mxu0 0.0
  %209 = vmatpush.msra.mxu0 0.0
  %210 = vmatpush.msra.mxu0 0.0
  %211 = vmatpush.msra.mxu0 0.0
  %212 = vmatpush.msra.mxu0 0.0
  %213 = vmatpush.msra.mxu0 0.0
  %214 = vmatpush.msra.mxu0 %v47
  %215 = vmatmul.f32.gmra.mxu0 %v197
  %v216 = vpop.f32.mrf.mxu0
  %v217 = vadd.f32 %v39, %v216
  %218 = vdwg.mxu0
  %s219 = scalar_lea.vmem %s0, 56
  %v220 = vld [vmem:[%s219] sm:$0xff]
  %v222 = vsel %vm41, %v220, 0
  %224 = vmatpush.msra.mxu0 0.0
  %225 = vmatpush.msra.mxu0 0.0
  %226 = vmatpush.msra.mxu0 0.0
  %227 = vmatpush.msra.mxu0 0.0
  %228 = vmatpush.msra.mxu0 0.0
  %229 = vmatpush.msra.mxu0 0.0
  %230 = vmatpush.msra.mxu0 0.0
  %231 = vmatpush.msra.mxu0 0.0
  %232 = vmatpush.msra.mxu0 0.0
  %233 = vmatpush.msra.mxu0 0.0
  %234 = vmatpush.msra.mxu0 0.0
  %235 = vmatpush.msra.mxu0 0.0
  %236 = vmatpush.msra.mxu0 0.0
  %237 = vmatpush.msra.mxu0 0.0
  %238 = vmatpush.msra.mxu0 0.0
  %239 = vmatpush.msra.mxu0 %v47
  %240 = vmatmul.f32.gmra.mxu0 %v222
  %v241 = vpop.f32.mrf.mxu0
  %v242 = vadd.f32 %v39, %v241
  %243 = vdwg.mxu0
  %v244 = vld [vmem:[%s2] sm:$0xff]
  %v245 = vld [vmem:[%s2 + $0x8] sm:$0xff]
  %v246 = vld [vmem:[%s2 + $0x10] sm:$0xff]
  %v247 = vld [vmem:[%s2 + $0x18] sm:$0xff]
  %v248 = vld [vmem:[%s4] sm:$0xff]
  %v249 = vld [vmem:[%s4 + $0x8] sm:$0xff]
  %v250 = vld [vmem:[%s4 + $0x10] sm:$0xff]
  %v251 = vld [vmem:[%s4 + $0x18] sm:$0xff]
  %v252 = vld [vmem:[%s6] sm:$0x1]
  %vm253 = vcmask 261120
  %v255 = vsel %vm253, 0.0, 0
  %257 = vmatpush.msra.mxu0 0.0
  %258 = vmatpush.msra.mxu0 0.0
  %259 = vmatpush.msra.mxu0 0.0
  %260 = vmatpush.msra.mxu0 0.0
  %261 = vmatpush.msra.mxu0 0.0
  %262 = vmatpush.msra.mxu0 0.0
  %263 = vmatpush.msra.mxu0 0.0
  %264 = vmatpush.msra.mxu0 0.0
  %265 = vmatpush.msra.mxu0 0.0
  %266 = vmatpush.msra.mxu0 0.0
  %267 = vmatpush.msra.mxu0 0.0
  %268 = vmatpush.msra.mxu0 0.0
  %269 = vmatpush.msra.mxu0 %v247
  %270 = vmatpush.msra.mxu0 %v246
  %271 = vmatpush.msra.mxu0 %v245
  %272 = vmatpush.msra.mxu0 %v244
  %273 = vmatmul.f32.gmra.mxu0 %v255
  %v274 = vpop.f32.mrf.mxu0
  %v275 = vadd.f32 0.0, %v274
  %276 = vdwg.mxu0
  %v277 = vadd.f32 %v67, %v275
  %v278 = vtanh.pop %v277
  %v279 = vadd.f32 %v278, 1.0
  %v280 = vmul.f32 %v279, 0.5
  %v281 = vmul.f32 %v280, 0.0
  %283 = vrot.lane.b32.xlu0 %v278, 64
  %v284 = vpop.permute.xlu0 %283
  %v286 = vmul.f32 %v280, %v284
  %288 = vrot.lane.b32.xlu0 %v286, 32
  %v289 = vpop.permute.xlu0 %288
  %v291 = vadd.f32 %v281, %v289
  %v292 = vtanh.pop %v291
  %294 = vrot.lane.b32.xlu0 %v292, 64
  %v295 = vpop.permute.xlu0 %294
  %v297 = vmul.f32 %v280, %v295
  %v299 = vperm.slane %v252, 0
  %302 = vrot.lane.b32.xlu0 %v297, 32
  %v303 = vpop.permute.xlu0 %302
  %v304 = vsel %vm253, %v303, 0
  %306 = vmatpush.msra.mxu0 0.0
  %307 = vmatpush.msra.mxu0 0.0
  %308 = vmatpush.msra.mxu0 0.0
  %309 = vmatpush.msra.mxu0 0.0
  %310 = vmatpush.msra.mxu0 0.0
  %311 = vmatpush.msra.mxu0 0.0
  %312 = vmatpush.msra.mxu0 0.0
  %313 = vmatpush.msra.mxu0 0.0
  %314 = vmatpush.msra.mxu0 0.0
  %315 = vmatpush.msra.mxu0 0.0
  %316 = vmatpush.msra.mxu0 0.0
  %317 = vmatpush.msra.mxu0 0.0
  %318 = vmatpush.msra.mxu0 %v251
  %319 = vmatpush.msra.mxu0 %v250
  %320 = vmatpush.msra.mxu0 %v249
  %321 = vmatpush.msra.mxu0 %v248
  %322 = vmatmul.f32.gmra.mxu0 %v304
  %v323 = vpop.f32.mrf.mxu0
  %v324 = vadd.f32 %v299, %v323
  %325 = vdwg.mxu0
  %326 = vmatpush.msra.mxu0 0.0
  %327 = vmatpush.msra.mxu0 0.0
  %328 = vmatpush.msra.mxu0 0.0
  %329 = vmatpush.msra.mxu0 0.0
  %330 = vmatpush.msra.mxu0 0.0
  %331 = vmatpush.msra.mxu0 0.0
  %332 = vmatpush.msra.mxu0 0.0
  %333 = vmatpush.msra.mxu0 0.0
  %334 = vmatpush.msra.mxu0 0.0
  %335 = vmatpush.msra.mxu0 0.0
  %336 = vmatpush.msra.mxu0 0.0
  %337 = vmatpush.msra.mxu0 0.0
  %338 = vmatpush.msra.mxu0 %v247
  %339 = vmatpush.msra.mxu0 %v246
  %340 = vmatpush.msra.mxu0 %v245
  %341 = vmatpush.msra.mxu0 %v244
  %342 = vmatmul.f32.gmra.mxu0 %v304
  %v343 = vpop.f32.mrf.mxu0
  %v344 = vadd.f32 0.0, %v343
  %345 = vdwg.mxu0
  %v346 = vadd.f32 %v92, %v344
  %v347 = vtanh.pop %v346
  %v348 = vadd.f32 %v347, 1.0
  %v349 = vmul.f32 %v348, 0.5
  %v350 = vmul.f32 %v349, %v291
  %352 = vrot.lane.b32.xlu0 %v347, 64
  %v353 = vpop.permute.xlu0 %352
  %v355 = vmul.f32 %v349, %v353
  %357 = vrot.lane.b32.xlu0 %v355, 32
  %v358 = vpop.permute.xlu0 %357
  %v360 = vadd.f32 %v350, %v358
  %v361 = vtanh.pop %v360
  %363 = vrot.lane.b32.xlu0 %v361, 64
  %v364 = vpop.permute.xlu0 %363
  %v366 = vmul.f32 %v349, %v364
  %368 = vrot.lane.b32.xlu0 %v366, 32
  %v369 = vpop.permute.xlu0 %368
  %v370 = vsel %vm253, %v369, 0
  %372 = vmatpush.msra.mxu0 0.0
  %373 = vmatpush.msra.mxu0 0.0
  %374 = vmatpush.msra.mxu0 0.0
  %375 = vmatpush.msra.mxu0 0.0
  %376 = vmatpush.msra.mxu0 0.0
  %377 = vmatpush.msra.mxu0 0.0
  %378 = vmatpush.msra.mxu0 0.0
  %379 = vmatpush.msra.mxu0 0.0
  %380 = vmatpush.msra.mxu0 0.0
  %381 = vmatpush.msra.mxu0 0.0
  %382 = vmatpush.msra.mxu0 0.0
  %383 = vmatpush.msra.mxu0 0.0
  %384 = vmatpush.msra.mxu0 %v251
  %385 = vmatpush.msra.mxu0 %v250
  %386 = vmatpush.msra.mxu0 %v249
  %387 = vmatpush.msra.mxu0 %v248
  %388 = vmatmul.f32.gmra.mxu0 %v370
  %v389 = vpop.f32.mrf.mxu0
  %v390 = vadd.f32 %v299, %v389
  %391 = vdwg.mxu0
  %392 = vmatpush.msra.mxu0 0.0
  %393 = vmatpush.msra.mxu0 0.0
  %394 = vmatpush.msra.mxu0 0.0
  %395 = vmatpush.msra.mxu0 0.0
  %396 = vmatpush.msra.mxu0 0.0
  %397 = vmatpush.msra.mxu0 0.0
  %398 = vmatpush.msra.mxu0 0.0
  %399 = vmatpush.msra.mxu0 0.0
  %400 = vmatpush.msra.mxu0 0.0
  %401 = vmatpush.msra.mxu0 0.0
  %402 = vmatpush.msra.mxu0 0.0
  %403 = vmatpush.msra.mxu0 0.0
  %404 = vmatpush.msra.mxu0 %v247
  %405 = vmatpush.msra.mxu0 %v246
  %406 = vmatpush.msra.mxu0 %v245
  %407 = vmatpush.msra.mxu0 %v244
  %408 = vmatmul.f32.gmra.mxu0 %v370
  %v409 = vpop.f32.mrf.mxu0
  %v410 = vadd.f32 0.0, %v409
  %411 = vdwg.mxu0
  %v412 = vadd.f32 %v117, %v410
  %v413 = vtanh.pop %v412
  %v414 = vadd.f32 %v413, 1.0
  %v415 = vmul.f32 %v414, 0.5
  %v416 = vmul.f32 %v415, %v360
  %418 = vrot.lane.b32.xlu0 %v413, 64
  %v419 = vpop.permute.xlu0 %418
  %v421 = vmul.f32 %v415, %v419
  %423 = vrot.lane.b32.xlu0 %v421, 32
  %v424 = vpop.permute.xlu0 %423
  %v426 = vadd.f32 %v416, %v424
  %v427 = vtanh.pop %v426
  %429 = vrot.lane.b32.xlu0 %v427, 64
  %v430 = vpop.permute.xlu0 %429
  %v432 = vmul.f32 %v415, %v430
  %434 = vrot.lane.b32.xlu0 %v432, 32
  %v435 = vpop.permute.xlu0 %434
  %v436 = vsel %vm253, %v435, 0
  %438 = vmatpush.msra.mxu0 0.0
  %439 = vmatpush.msra.mxu0 0.0
  %440 = vmatpush.msra.mxu0 0.0
  %441 = vmatpush.msra.mxu0 0.0
  %442 = vmatpush.msra.mxu0 0.0
  %443 = vmatpush.msra.mxu0 0.0
  %444 = vmatpush.msra.mxu0 0.0
  %445 = vmatpush.msra.mxu0 0.0
  %446 = vmatpush.msra.mxu0 0.0
  %447 = vmatpush.msra.mxu0 0.0
  %448 = vmatpush.msra.mxu0 0.0
  %449 = vmatpush.msra.mxu0 0.0
  %450 = vmatpush.msra.mxu0 %v251
  %451 = vmatpush.msra.mxu0 %v250
  %452 = vmatpush.msra.mxu0 %v249
  %453 = vmatpush.msra.mxu0 %v248
  %454 = vmatmul.f32.gmra.mxu0 %v436
  %v455 = vpop.f32.mrf.mxu0
  %v456 = vadd.f32 %v299, %v455
  %457 = vdwg.mxu0
  %458 = vmatpush.msra.mxu0 0.0
  %459 = vmatpush.msra.mxu0 0.0
  %460 = vmatpush.msra.mxu0 0.0
  %461 = vmatpush.msra.mxu0 0.0
  %462 = vmatpush.msra.mxu0 0.0
  %463 = vmatpush.msra.mxu0 0.0
  %464 = vmatpush.msra.mxu0 0.0
  %465 = vmatpush.msra.mxu0 0.0
  %466 = vmatpush.msra.mxu0 0.0
  %467 = vmatpush.msra.mxu0 0.0
  %468 = vmatpush.msra.mxu0 0.0
  %469 = vmatpush.msra.mxu0 0.0
  %470 = vmatpush.msra.mxu0 %v247
  %471 = vmatpush.msra.mxu0 %v246
  %472 = vmatpush.msra.mxu0 %v245
  %473 = vmatpush.msra.mxu0 %v244
  %474 = vmatmul.f32.gmra.mxu0 %v436
  %v475 = vpop.f32.mrf.mxu0
  %v476 = vadd.f32 0.0, %v475
  %477 = vdwg.mxu0
  %v478 = vadd.f32 %v142, %v476
  %v479 = vtanh.pop %v478
  %v480 = vadd.f32 %v479, 1.0
  %v481 = vmul.f32 %v480, 0.5
  %v482 = vmul.f32 %v481, %v426
  %484 = vrot.lane.b32.xlu0 %v479, 64
  %v485 = vpop.permute.xlu0 %484
  %v487 = vmul.f32 %v481, %v485
  %489 = vrot.lane.b32.xlu0 %v487, 32
  %v490 = vpop.permute.xlu0 %489
  %v492 = vadd.f32 %v482, %v490
  %v493 = vtanh.pop %v492
  %495 = vrot.lane.b32.xlu0 %v493, 64
  %v496 = vpop.permute.xlu0 %495
  %v498 = vmul.f32 %v481, %v496
  %500 = vrot.lane.b32.xlu0 %v498, 32
  %v501 = vpop.permute.xlu0 %500
  %v502 = vsel %vm253, %v501, 0
  %504 = vmatpush.msra.mxu0 0.0
  %505 = vmatpush.msra.mxu0 0.0
  %506 = vmatpush.msra.mxu0 0.0
  %507 = vmatpush.msra.mxu0 0.0
  %508 = vmatpush.msra.mxu0 0.0
  %509 = vmatpush.msra.mxu0 0.0
  %510 = vmatpush.msra.mxu0 0.0
  %511 = vmatpush.msra.mxu0 0.0
  %512 = vmatpush.msra.mxu0 0.0
  %513 = vmatpush.msra.mxu0 0.0
  %514 = vmatpush.msra.mxu0 0.0
  %515 = vmatpush.msra.mxu0 0.0
  %516 = vmatpush.msra.mxu0 %v251
  %517 = vmatpush.msra.mxu0 %v250
  %518 = vmatpush.msra.mxu0 %v249
  %519 = vmatpush.msra.mxu0 %v248
  %520 = vmatmul.f32.gmra.mxu0 %v502
  %v521 = vpop.f32.mrf.mxu0
  %v522 = vadd.f32 %v299, %v521
  %523 = vdwg.mxu0
  %524 = vmatpush.msra.mxu0 0.0
  %525 = vmatpush.msra.mxu0 0.0
  %526 = vmatpush.msra.mxu0 0.0
  %527 = vmatpush.msra.mxu0 0.0
  %528 = vmatpush.msra.mxu0 0.0
  %529 = vmatpush.msra.mxu0 0.0
  %530 = vmatpush.msra.mxu0 0.0
  %531 = vmatpush.msra.mxu0 0.0
  %532 = vmatpush.msra.mxu0 0.0
  %533 = vmatpush.msra.mxu0 0.0
  %534 = vmatpush.msra.mxu0 0.0
  %535 = vmatpush.msra.mxu0 0.0
  %536 = vmatpush.msra.mxu0 %v247
  %537 = vmatpush.msra.mxu0 %v246
  %538 = vmatpush.msra.mxu0 %v245
  %539 = vmatpush.msra.mxu0 %v244
  %540 = vmatmul.f32.gmra.mxu0 %v502
  %v541 = vpop.f32.mrf.mxu0
  %v542 = vadd.f32 0.0, %v541
  %543 = vdwg.mxu0
  %v544 = vadd.f32 %v167, %v542
  %v545 = vtanh.pop %v544
  %v546 = vadd.f32 %v545, 1.0
  %v547 = vmul.f32 %v546, 0.5
  %v548 = vmul.f32 %v547, %v492
  %550 = vrot.lane.b32.xlu0 %v545, 64
  %v551 = vpop.permute.xlu0 %550
  %v553 = vmul.f32 %v547, %v551
  %555 = vrot.lane.b32.xlu0 %v553, 32
  %v556 = vpop.permute.xlu0 %555
  %v558 = vadd.f32 %v548, %v556
  %v559 = vtanh.pop %v558
  %561 = vrot.lane.b32.xlu0 %v559, 64
  %v562 = vpop.permute.xlu0 %561
  %v564 = vmul.f32 %v547, %v562
  %566 = vrot.lane.b32.xlu0 %v564, 32
  %v567 = vpop.permute.xlu0 %566
  %v568 = vsel %vm253, %v567, 0
  %570 = vmatpush.msra.mxu0 0.0
  %571 = vmatpush.msra.mxu0 0.0
  %572 = vmatpush.msra.mxu0 0.0
  %573 = vmatpush.msra.mxu0 0.0
  %574 = vmatpush.msra.mxu0 0.0
  %575 = vmatpush.msra.mxu0 0.0
  %576 = vmatpush.msra.mxu0 0.0
  %577 = vmatpush.msra.mxu0 0.0
  %578 = vmatpush.msra.mxu0 0.0
  %579 = vmatpush.msra.mxu0 0.0
  %580 = vmatpush.msra.mxu0 0.0
  %581 = vmatpush.msra.mxu0 0.0
  %582 = vmatpush.msra.mxu0 %v251
  %583 = vmatpush.msra.mxu0 %v250
  %584 = vmatpush.msra.mxu0 %v249
  %585 = vmatpush.msra.mxu0 %v248
  %586 = vmatmul.f32.gmra.mxu0 %v568
  %v587 = vpop.f32.mrf.mxu0
  %v588 = vadd.f32 %v299, %v587
  %589 = vdwg.mxu0
  %590 = vmatpush.msra.mxu0 0.0
  %591 = vmatpush.msra.mxu0 0.0
  %592 = vmatpush.msra.mxu0 0.0
  %593 = vmatpush.msra.mxu0 0.0
  %594 = vmatpush.msra.mxu0 0.0
  %595 = vmatpush.msra.mxu0 0.0
  %596 = vmatpush.msra.mxu0 0.0
  %597 = vmatpush.msra.mxu0 0.0
  %598 = vmatpush.msra.mxu0 0.0
  %599 = vmatpush.msra.mxu0 0.0
  %600 = vmatpush.msra.mxu0 0.0
  %601 = vmatpush.msra.mxu0 0.0
  %602 = vmatpush.msra.mxu0 %v247
  %603 = vmatpush.msra.mxu0 %v246
  %604 = vmatpush.msra.mxu0 %v245
  %605 = vmatpush.msra.mxu0 %v244
  %606 = vmatmul.f32.gmra.mxu0 %v568
  %v607 = vpop.f32.mrf.mxu0
  %v608 = vadd.f32 0.0, %v607
  %609 = vdwg.mxu0
  %v610 = vadd.f32 %v192, %v608
  %v611 = vtanh.pop %v610
  %v612 = vadd.f32 %v611, 1.0
  %v613 = vmul.f32 %v612, 0.5
  %v614 = vmul.f32 %v613, %v558
  %616 = vrot.lane.b32.xlu0 %v611, 64
  %v617 = vpop.permute.xlu0 %616
  %v619 = vmul.f32 %v613, %v617
  %621 = vrot.lane.b32.xlu0 %v619, 32
  %v622 = vpop.permute.xlu0 %621
  %v624 = vadd.f32 %v614, %v622
  %v625 = vtanh.pop %v624
  %627 = vrot.lane.b32.xlu0 %v625, 64
  %v628 = vpop.permute.xlu0 %627
  %v630 = vmul.f32 %v613, %v628
  %632 = vrot.lane.b32.xlu0 %v630, 32
  %v633 = vpop.permute.xlu0 %632
  %v634 = vsel %vm253, %v633, 0
  %636 = vmatpush.msra.mxu0 0.0
  %637 = vmatpush.msra.mxu0 0.0
  %638 = vmatpush.msra.mxu0 0.0
  %639 = vmatpush.msra.mxu0 0.0
  %640 = vmatpush.msra.mxu0 0.0
  %641 = vmatpush.msra.mxu0 0.0
  %642 = vmatpush.msra.mxu0 0.0
  %643 = vmatpush.msra.mxu0 0.0
  %644 = vmatpush.msra.mxu0 0.0
  %645 = vmatpush.msra.mxu0 0.0
  %646 = vmatpush.msra.mxu0 0.0
  %647 = vmatpush.msra.mxu0 0.0
  %648 = vmatpush.msra.mxu0 %v251
  %649 = vmatpush.msra.mxu0 %v250
  %650 = vmatpush.msra.mxu0 %v249
  %651 = vmatpush.msra.mxu0 %v248
  %652 = vmatmul.f32.gmra.mxu0 %v634
  %v653 = vpop.f32.mrf.mxu0
  %v654 = vadd.f32 %v299, %v653
  %655 = vdwg.mxu0
  %656 = vmatpush.msra.mxu0 0.0
  %657 = vmatpush.msra.mxu0 0.0
  %658 = vmatpush.msra.mxu0 0.0
  %659 = vmatpush.msra.mxu0 0.0
  %660 = vmatpush.msra.mxu0 0.0
  %661 = vmatpush.msra.mxu0 0.0
  %662 = vmatpush.msra.mxu0 0.0
  %663 = vmatpush.msra.mxu0 0.0
  %664 = vmatpush.msra.mxu0 0.0
  %665 = vmatpush.msra.mxu0 0.0
  %666 = vmatpush.msra.mxu0 0.0
  %667 = vmatpush.msra.mxu0 0.0
  %668 = vmatpush.msra.mxu0 %v247
  %669 = vmatpush.msra.mxu0 %v246
  %670 = vmatpush.msra.mxu0 %v245
  %671 = vmatpush.msra.mxu0 %v244
  %672 = vmatmul.f32.gmra.mxu0 %v634
  %v673 = vpop.f32.mrf.mxu0
  %v674 = vadd.f32 0.0, %v673
  %675 = vdwg.mxu0
  %v676 = vadd.f32 %v217, %v674
  %v677 = vtanh.pop %v676
  %v678 = vadd.f32 %v677, 1.0
  %v679 = vmul.f32 %v678, 0.5
  %v680 = vmul.f32 %v679, %v624
  %682 = vrot.lane.b32.xlu0 %v677, 64
  %v683 = vpop.permute.xlu0 %682
  %v685 = vmul.f32 %v679, %v683
  %687 = vrot.lane.b32.xlu0 %v685, 32
  %v688 = vpop.permute.xlu0 %687
  %v690 = vadd.f32 %v680, %v688
  %v691 = vtanh.pop %v690
  %693 = vrot.lane.b32.xlu0 %v691, 64
  %v694 = vpop.permute.xlu0 %693
  %v696 = vmul.f32 %v679, %v694
  %698 = vrot.lane.b32.xlu0 %v696, 32
  %v699 = vpop.permute.xlu0 %698
  %v700 = vsel %vm253, %v699, 0
  %702 = vmatpush.msra.mxu0 0.0
  %703 = vmatpush.msra.mxu0 0.0
  %704 = vmatpush.msra.mxu0 0.0
  %705 = vmatpush.msra.mxu0 0.0
  %706 = vmatpush.msra.mxu0 0.0
  %707 = vmatpush.msra.mxu0 0.0
  %708 = vmatpush.msra.mxu0 0.0
  %709 = vmatpush.msra.mxu0 0.0
  %710 = vmatpush.msra.mxu0 0.0
  %711 = vmatpush.msra.mxu0 0.0
  %712 = vmatpush.msra.mxu0 0.0
  %713 = vmatpush.msra.mxu0 0.0
  %714 = vmatpush.msra.mxu0 %v251
  %715 = vmatpush.msra.mxu0 %v250
  %716 = vmatpush.msra.mxu0 %v249
  %717 = vmatpush.msra.mxu0 %v248
  %718 = vmatmul.f32.gmra.mxu0 %v700
  %v719 = vpop.f32.mrf.mxu0
  %v720 = vadd.f32 %v299, %v719
  %721 = vdwg.mxu0
  %722 = vmatpush.msra.mxu0 0.0
  %723 = vmatpush.msra.mxu0 0.0
  %724 = vmatpush.msra.mxu0 0.0
  %725 = vmatpush.msra.mxu0 0.0
  %726 = vmatpush.msra.mxu0 0.0
  %727 = vmatpush.msra.mxu0 0.0
  %728 = vmatpush.msra.mxu0 0.0
  %729 = vmatpush.msra.mxu0 0.0
  %730 = vmatpush.msra.mxu0 0.0
  %731 = vmatpush.msra.mxu0 0.0
  %732 = vmatpush.msra.mxu0 0.0
  %733 = vmatpush.msra.mxu0 0.0
  %734 = vmatpush.msra.mxu0 %v247
  %735 = vmatpush.msra.mxu0 %v246
  %736 = vmatpush.msra.mxu0 %v245
  %737 = vmatpush.msra.mxu0 %v244
  %738 = vmatmul.f32.gmra.mxu0 %v700
  %v739 = vpop.f32.mrf.mxu0
  %v740 = vadd.f32 0.0, %v739
  %741 = vdwg.mxu0
  %v742 = vadd.f32 %v242, %v740
  %v743 = vtanh.pop %v742
  %v744 = vadd.f32 %v743, 1.0
  %v745 = vmul.f32 %v744, 0.5
  %v746 = vmul.f32 %v745, %v690
  %748 = vrot.lane.b32.xlu0 %v743, 64
  %v749 = vpop.permute.xlu0 %748
  %v751 = vmul.f32 %v745, %v749
  %753 = vrot.lane.b32.xlu0 %v751, 32
  %v754 = vpop.permute.xlu0 %753
  %v756 = vadd.f32 %v746, %v754
  %v757 = vtanh.pop %v756
  %759 = vrot.lane.b32.xlu0 %v757, 64
  %v760 = vpop.permute.xlu0 %759
  %v762 = vmul.f32 %v745, %v760
  %764 = vrot.lane.b32.xlu0 %v762, 32
  %v765 = vpop.permute.xlu0 %764
  %v766 = vsel %vm253, %v765, 0
  %768 = vmatpush.msra.mxu0 0.0
  %769 = vmatpush.msra.mxu0 0.0
  %770 = vmatpush.msra.mxu0 0.0
  %771 = vmatpush.msra.mxu0 0.0
  %772 = vmatpush.msra.mxu0 0.0
  %773 = vmatpush.msra.mxu0 0.0
  %774 = vmatpush.msra.mxu0 0.0
  %775 = vmatpush.msra.mxu0 0.0
  %776 = vmatpush.msra.mxu0 0.0
  %777 = vmatpush.msra.mxu0 0.0
  %778 = vmatpush.msra.mxu0 0.0
  %779 = vmatpush.msra.mxu0 0.0
  %780 = vmatpush.msra.mxu0 %v251
  %781 = vmatpush.msra.mxu0 %v250
  %782 = vmatpush.msra.mxu0 %v249
  %783 = vmatpush.msra.mxu0 %v248
  %784 = vmatmul.f32.gmra.mxu0 %v766
  %v785 = vpop.f32.mrf.mxu0
  %v786 = vadd.f32 %v299, %v785
  %787 = vdwg.mxu0
  %v788 = vld [vmem:[%s5] sm:$0xff]
  %v789 = vld [vmem:[%s5 + $0x8] sm:$0xff]
  %v790 = vld [vmem:[%s5 + $0x10] sm:$0xff]
  %v791 = vld [vmem:[%s5 + $0x18] sm:$0xff]
  %v792 = vld [vmem:[%s7] sm:$0xff]
  %v793 = vld [vmem:[%s7 + $0x8] sm:$0xff]
  %v794 = vld [vmem:[%s7 + $0x10] sm:$0xff]
  %v795 = vld [vmem:[%s7 + $0x18] sm:$0xff]
  %v796 = vld [vmem:[%s9] sm:$0x1]
  %797 = vmatpush.msra.mxu0 0.0
  %798 = vmatpush.msra.mxu0 0.0
  %799 = vmatpush.msra.mxu0 0.0
  %800 = vmatpush.msra.mxu0 0.0
  %801 = vmatpush.msra.mxu0 0.0
  %802 = vmatpush.msra.mxu0 0.0
  %803 = vmatpush.msra.mxu0 0.0
  %804 = vmatpush.msra.mxu0 0.0
  %805 = vmatpush.msra.mxu0 0.0
  %806 = vmatpush.msra.mxu0 0.0
  %807 = vmatpush.msra.mxu0 0.0
  %808 = vmatpush.msra.mxu0 0.0
  %809 = vmatpush.msra.mxu0 %v791
  %810 = vmatpush.msra.mxu0 %v790
  %811 = vmatpush.msra.mxu0 %v789
  %812 = vmatpush.msra.mxu0 %v788
  %813 = vmatmul.f32.gmra.mxu0 %v255
  %v814 = vpop.f32.mrf.mxu0
  %v815 = vadd.f32 0.0, %v814
  %816 = vdwg.mxu0
  %v817 = vadd.f32 %v324, %v815
  %v818 = vtanh.pop %v817
  %v819 = vadd.f32 %v818, 1.0
  %v820 = vmul.f32 %v819, 0.5
  %v821 = vmul.f32 %v820, 0.0
  %823 = vrot.lane.b32.xlu0 %v818, 64
  %v824 = vpop.permute.xlu0 %823
  %v826 = vmul.f32 %v820, %v824
  %828 = vrot.lane.b32.xlu0 %v826, 32
  %v829 = vpop.permute.xlu0 %828
  %v831 = vadd.f32 %v821, %v829
  %v832 = vtanh.pop %v831
  %834 = vrot.lane.b32.xlu0 %v832, 64
  %v835 = vpop.permute.xlu0 %834
  %v837 = vmul.f32 %v820, %v835
  %v839 = vperm.slane %v796, 0
  %842 = vrot.lane.b32.xlu0 %v837, 32
  %v843 = vpop.permute.xlu0 %842
  %v844 = vsel %vm253, %v843, 0
  %846 = vmatpush.msra.mxu0 0.0
  %847 = vmatpush.msra.mxu0 0.0
  %848 = vmatpush.msra.mxu0 0.0
  %849 = vmatpush.msra.mxu0 0.0
  %850 = vmatpush.msra.mxu0 0.0
  %851 = vmatpush.msra.mxu0 0.0
  %852 = vmatpush.msra.mxu0 0.0
  %853 = vmatpush.msra.mxu0 0.0
  %854 = vmatpush.msra.mxu0 0.0
  %855 = vmatpush.msra.mxu0 0.0
  %856 = vmatpush.msra.mxu0 0.0
  %857 = vmatpush.msra.mxu0 0.0
  %858 = vmatpush.msra.mxu0 %v795
  %859 = vmatpush.msra.mxu0 %v794
  %860 = vmatpush.msra.mxu0 %v793
  %861 = vmatpush.msra.mxu0 %v792
  %862 = vmatmul.f32.gmra.mxu0 %v844
  %v863 = vpop.f32.mrf.mxu0
  %v864 = vadd.f32 %v839, %v863
  %865 = vdwg.mxu0
  %866 = vmatpush.msra.mxu0 0.0
  %867 = vmatpush.msra.mxu0 0.0
  %868 = vmatpush.msra.mxu0 0.0
  %869 = vmatpush.msra.mxu0 0.0
  %870 = vmatpush.msra.mxu0 0.0
  %871 = vmatpush.msra.mxu0 0.0
  %872 = vmatpush.msra.mxu0 0.0
  %873 = vmatpush.msra.mxu0 0.0
  %874 = vmatpush.msra.mxu0 0.0
  %875 = vmatpush.msra.mxu0 0.0
  %876 = vmatpush.msra.mxu0 0.0
  %877 = vmatpush.msra.mxu0 0.0
  %878 = vmatpush.msra.mxu0 %v791
  %879 = vmatpush.msra.mxu0 %v790
  %880 = vmatpush.msra.mxu0 %v789
  %881 = vmatpush.msra.mxu0 %v788
  %882 = vmatmul.f32.gmra.mxu0 %v844
  %v883 = vpop.f32.mrf.mxu0
  %v884 = vadd.f32 0.0, %v883
  %885 = vdwg.mxu0
  %v886 = vadd.f32 %v390, %v884
  %v887 = vtanh.pop %v886
  %v888 = vadd.f32 %v887, 1.0
  %v889 = vmul.f32 %v888, 0.5
  %v890 = vmul.f32 %v889, %v831
  %892 = vrot.lane.b32.xlu0 %v887, 64
  %v893 = vpop.permute.xlu0 %892
  %v895 = vmul.f32 %v889, %v893
  %897 = vrot.lane.b32.xlu0 %v895, 32
  %v898 = vpop.permute.xlu0 %897
  %v900 = vadd.f32 %v890, %v898
  %v901 = vtanh.pop %v900
  %903 = vrot.lane.b32.xlu0 %v901, 64
  %v904 = vpop.permute.xlu0 %903
  %v906 = vmul.f32 %v889, %v904
  %908 = vrot.lane.b32.xlu0 %v906, 32
  %v909 = vpop.permute.xlu0 %908
  %v910 = vsel %vm253, %v909, 0
  %912 = vmatpush.msra.mxu0 0.0
  %913 = vmatpush.msra.mxu0 0.0
  %914 = vmatpush.msra.mxu0 0.0
  %915 = vmatpush.msra.mxu0 0.0
  %916 = vmatpush.msra.mxu0 0.0
  %917 = vmatpush.msra.mxu0 0.0
  %918 = vmatpush.msra.mxu0 0.0
  %919 = vmatpush.msra.mxu0 0.0
  %920 = vmatpush.msra.mxu0 0.0
  %921 = vmatpush.msra.mxu0 0.0
  %922 = vmatpush.msra.mxu0 0.0
  %923 = vmatpush.msra.mxu0 0.0
  %924 = vmatpush.msra.mxu0 %v795
  %925 = vmatpush.msra.mxu0 %v794
  %926 = vmatpush.msra.mxu0 %v793
  %927 = vmatpush.msra.mxu0 %v792
  %928 = vmatmul.f32.gmra.mxu0 %v910
  %v929 = vpop.f32.mrf.mxu0
  %v930 = vadd.f32 %v839, %v929
  %931 = vdwg.mxu0
  %932 = vmatpush.msra.mxu0 0.0
  %933 = vmatpush.msra.mxu0 0.0
  %934 = vmatpush.msra.mxu0 0.0
  %935 = vmatpush.msra.mxu0 0.0
  %936 = vmatpush.msra.mxu0 0.0
  %937 = vmatpush.msra.mxu0 0.0
  %938 = vmatpush.msra.mxu0 0.0
  %939 = vmatpush.msra.mxu0 0.0
  %940 = vmatpush.msra.mxu0 0.0
  %941 = vmatpush.msra.mxu0 0.0
  %942 = vmatpush.msra.mxu0 0.0
  %943 = vmatpush.msra.mxu0 0.0
  %944 = vmatpush.msra.mxu0 %v791
  %945 = vmatpush.msra.mxu0 %v790
  %946 = vmatpush.msra.mxu0 %v789
  %947 = vmatpush.msra.mxu0 %v788
  %948 = vmatmul.f32.gmra.mxu0 %v910
  %v949 = vpop.f32.mrf.mxu0
  %v950 = vadd.f32 0.0, %v949
  %951 = vdwg.mxu0
  %v952 = vadd.f32 %v456, %v950
  %v953 = vtanh.pop %v952
  %v954 = vadd.f32 %v953, 1.0
  %v955 = vmul.f32 %v954, 0.5
  %v956 = vmul.f32 %v955, %v900
  %958 = vrot.lane.b32.xlu0 %v953, 64
  %v959 = vpop.permute.xlu0 %958
  %v961 = vmul.f32 %v955, %v959
  %963 = vrot.lane.b32.xlu0 %v961, 32
  %v964 = vpop.permute.xlu0 %963
  %v966 = vadd.f32 %v956, %v964
  %v967 = vtanh.pop %v966
  %969 = vrot.lane.b32.xlu0 %v967, 64
  %v970 = vpop.permute.xlu0 %969
  %v972 = vmul.f32 %v955, %v970
  %974 = vrot.lane.b32.xlu0 %v972, 32
  %v975 = vpop.permute.xlu0 %974
  %v976 = vsel %vm253, %v975, 0
  %978 = vmatpush.msra.mxu0 0.0
  %979 = vmatpush.msra.mxu0 0.0
  %980 = vmatpush.msra.mxu0 0.0
  %981 = vmatpush.msra.mxu0 0.0
  %982 = vmatpush.msra.mxu0 0.0
  %983 = vmatpush.msra.mxu0 0.0
  %984 = vmatpush.msra.mxu0 0.0
  %985 = vmatpush.msra.mxu0 0.0
  %986 = vmatpush.msra.mxu0 0.0
  %987 = vmatpush.msra.mxu0 0.0
  %988 = vmatpush.msra.mxu0 0.0
  %989 = vmatpush.msra.mxu0 0.0
  %990 = vmatpush.msra.mxu0 %v795
  %991 = vmatpush.msra.mxu0 %v794
  %992 = vmatpush.msra.mxu0 %v793
  %993 = vmatpush.msra.mxu0 %v792
  %994 = vmatmul.f32.gmra.mxu0 %v976
  %v995 = vpop.f32.mrf.mxu0
  %v996 = vadd.f32 %v839, %v995
  %997 = vdwg.mxu0
  %998 = vmatpush.msra.mxu0 0.0
  %999 = vmatpush.msra.mxu0 0.0
  %1000 = vmatpush.msra.mxu0 0.0
  %1001 = vmatpush.msra.mxu0 0.0
  %1002 = vmatpush.msra.mxu0 0.0
  %1003 = vmatpush.msra.mxu0 0.0
  %1004 = vmatpush.msra.mxu0 0.0
  %1005 = vmatpush.msra.mxu0 0.0
  %1006 = vmatpush.msra.mxu0 0.0
  %1007 = vmatpush.msra.mxu0 0.0
  %1008 = vmatpush.msra.mxu0 0.0
  %1009 = vmatpush.msra.mxu0 0.0
  %1010 = vmatpush.msra.mxu0 %v791
  %1011 = vmatpush.msra.mxu0 %v790
  %1012 = vmatpush.msra.mxu0 %v789
  %1013 = vmatpush.msra.mxu0 %v788
  %1014 = vmatmul.f32.gmra.mxu0 %v976
  %v1015 = vpop.f32.mrf.mxu0
  %v1016 = vadd.f32 0.0, %v1015
  %1017 = vdwg.mxu0
  %v1018 = vadd.f32 %v522, %v1016
  %v1019 = vtanh.pop %v1018
  %v1020 = vadd.f32 %v1019, 1.0
  %v1021 = vmul.f32 %v1020, 0.5
  %v1022 = vmul.f32 %v1021, %v966
  %1024 = vrot.lane.b32.xlu0 %v1019, 64
  %v1025 = vpop.permute.xlu0 %1024
  %v1027 = vmul.f32 %v1021, %v1025
  %1029 = vrot.lane.b32.xlu0 %v1027, 32
  %v1030 = vpop.permute.xlu0 %1029
  %v1032 = vadd.f32 %v1022, %v1030
  %v1033 = vtanh.pop %v1032
  %1035 = vrot.lane.b32.xlu0 %v1033, 64
  %v1036 = vpop.permute.xlu0 %1035
  %v1038 = vmul.f32 %v1021, %v1036
  %1040 = vrot.lane.b32.xlu0 %v1038, 32
  %v1041 = vpop.permute.xlu0 %1040
  %v1042 = vsel %vm253, %v1041, 0
  %1044 = vmatpush.msra.mxu0 0.0
  %1045 = vmatpush.msra.mxu0 0.0
  %1046 = vmatpush.msra.mxu0 0.0
  %1047 = vmatpush.msra.mxu0 0.0
  %1048 = vmatpush.msra.mxu0 0.0
  %1049 = vmatpush.msra.mxu0 0.0
  %1050 = vmatpush.msra.mxu0 0.0
  %1051 = vmatpush.msra.mxu0 0.0
  %1052 = vmatpush.msra.mxu0 0.0
  %1053 = vmatpush.msra.mxu0 0.0
  %1054 = vmatpush.msra.mxu0 0.0
  %1055 = vmatpush.msra.mxu0 0.0
  %1056 = vmatpush.msra.mxu0 %v795
  %1057 = vmatpush.msra.mxu0 %v794
  %1058 = vmatpush.msra.mxu0 %v793
  %1059 = vmatpush.msra.mxu0 %v792
  %1060 = vmatmul.f32.gmra.mxu0 %v1042
  %v1061 = vpop.f32.mrf.mxu0
  %v1062 = vadd.f32 %v839, %v1061
  %1063 = vdwg.mxu0
  %1064 = vmatpush.msra.mxu0 0.0
  %1065 = vmatpush.msra.mxu0 0.0
  %1066 = vmatpush.msra.mxu0 0.0
  %1067 = vmatpush.msra.mxu0 0.0
  %1068 = vmatpush.msra.mxu0 0.0
  %1069 = vmatpush.msra.mxu0 0.0
  %1070 = vmatpush.msra.mxu0 0.0
  %1071 = vmatpush.msra.mxu0 0.0
  %1072 = vmatpush.msra.mxu0 0.0
  %1073 = vmatpush.msra.mxu0 0.0
  %1074 = vmatpush.msra.mxu0 0.0
  %1075 = vmatpush.msra.mxu0 0.0
  %1076 = vmatpush.msra.mxu0 %v791
  %1077 = vmatpush.msra.mxu0 %v790
  %1078 = vmatpush.msra.mxu0 %v789
  %1079 = vmatpush.msra.mxu0 %v788
  %1080 = vmatmul.f32.gmra.mxu0 %v1042
  %v1081 = vpop.f32.mrf.mxu0
  %v1082 = vadd.f32 0.0, %v1081
  %1083 = vdwg.mxu0
  %v1084 = vadd.f32 %v588, %v1082
  %v1085 = vtanh.pop %v1084
  %v1086 = vadd.f32 %v1085, 1.0
  %v1087 = vmul.f32 %v1086, 0.5
  %v1088 = vmul.f32 %v1087, %v1032
  %1090 = vrot.lane.b32.xlu0 %v1085, 64
  %v1091 = vpop.permute.xlu0 %1090
  %v1093 = vmul.f32 %v1087, %v1091
  %1095 = vrot.lane.b32.xlu0 %v1093, 32
  %v1096 = vpop.permute.xlu0 %1095
  %v1098 = vadd.f32 %v1088, %v1096
  %v1099 = vtanh.pop %v1098
  %1101 = vrot.lane.b32.xlu0 %v1099, 64
  %v1102 = vpop.permute.xlu0 %1101
  %v1104 = vmul.f32 %v1087, %v1102
  %1106 = vrot.lane.b32.xlu0 %v1104, 32
  %v1107 = vpop.permute.xlu0 %1106
  %v1108 = vsel %vm253, %v1107, 0
  %1110 = vmatpush.msra.mxu0 0.0
  %1111 = vmatpush.msra.mxu0 0.0
  %1112 = vmatpush.msra.mxu0 0.0
  %1113 = vmatpush.msra.mxu0 0.0
  %1114 = vmatpush.msra.mxu0 0.0
  %1115 = vmatpush.msra.mxu0 0.0
  %1116 = vmatpush.msra.mxu0 0.0
  %1117 = vmatpush.msra.mxu0 0.0
  %1118 = vmatpush.msra.mxu0 0.0
  %1119 = vmatpush.msra.mxu0 0.0
  %1120 = vmatpush.msra.mxu0 0.0
  %1121 = vmatpush.msra.mxu0 0.0
  %1122 = vmatpush.msra.mxu0 %v795
  %1123 = vmatpush.msra.mxu0 %v794
  %1124 = vmatpush.msra.mxu0 %v793
  %1125 = vmatpush.msra.mxu0 %v792
  %1126 = vmatmul.f32.gmra.mxu0 %v1108
  %v1127 = vpop.f32.mrf.mxu0
  %v1128 = vadd.f32 %v839, %v1127
  %1129 = vdwg.mxu0
  %1130 = vmatpush.msra.mxu0 0.0
  %1131 = vmatpush.msra.mxu0 0.0
  %1132 = vmatpush.msra.mxu0 0.0
  %1133 = vmatpush.msra.mxu0 0.0
  %1134 = vmatpush.msra.mxu0 0.0
  %1135 = vmatpush.msra.mxu0 0.0
  %1136 = vmatpush.msra.mxu0 0.0
  %1137 = vmatpush.msra.mxu0 0.0
  %1138 = vmatpush.msra.mxu0 0.0
  %1139 = vmatpush.msra.mxu0 0.0
  %1140 = vmatpush.msra.mxu0 0.0
  %1141 = vmatpush.msra.mxu0 0.0
  %1142 = vmatpush.msra.mxu0 %v791
  %1143 = vmatpush.msra.mxu0 %v790
  %1144 = vmatpush.msra.mxu0 %v789
  %1145 = vmatpush.msra.mxu0 %v788
  %1146 = vmatmul.f32.gmra.mxu0 %v1108
  %v1147 = vpop.f32.mrf.mxu0
  %v1148 = vadd.f32 0.0, %v1147
  %1149 = vdwg.mxu0
  %v1150 = vadd.f32 %v654, %v1148
  %v1151 = vtanh.pop %v1150
  %v1152 = vadd.f32 %v1151, 1.0
  %v1153 = vmul.f32 %v1152, 0.5
  %v1154 = vmul.f32 %v1153, %v1098
  %1156 = vrot.lane.b32.xlu0 %v1151, 64
  %v1157 = vpop.permute.xlu0 %1156
  %v1159 = vmul.f32 %v1153, %v1157
  %1161 = vrot.lane.b32.xlu0 %v1159, 32
  %v1162 = vpop.permute.xlu0 %1161
  %v1164 = vadd.f32 %v1154, %v1162
  %v1165 = vtanh.pop %v1164
  %1167 = vrot.lane.b32.xlu0 %v1165, 64
  %v1168 = vpop.permute.xlu0 %1167
  %v1170 = vmul.f32 %v1153, %v1168
  %1172 = vrot.lane.b32.xlu0 %v1170, 32
  %v1173 = vpop.permute.xlu0 %1172
  %v1174 = vsel %vm253, %v1173, 0
  %1176 = vmatpush.msra.mxu0 0.0
  %1177 = vmatpush.msra.mxu0 0.0
  %1178 = vmatpush.msra.mxu0 0.0
  %1179 = vmatpush.msra.mxu0 0.0
  %1180 = vmatpush.msra.mxu0 0.0
  %1181 = vmatpush.msra.mxu0 0.0
  %1182 = vmatpush.msra.mxu0 0.0
  %1183 = vmatpush.msra.mxu0 0.0
  %1184 = vmatpush.msra.mxu0 0.0
  %1185 = vmatpush.msra.mxu0 0.0
  %1186 = vmatpush.msra.mxu0 0.0
  %1187 = vmatpush.msra.mxu0 0.0
  %1188 = vmatpush.msra.mxu0 %v795
  %1189 = vmatpush.msra.mxu0 %v794
  %1190 = vmatpush.msra.mxu0 %v793
  %1191 = vmatpush.msra.mxu0 %v792
  %1192 = vmatmul.f32.gmra.mxu0 %v1174
  %v1193 = vpop.f32.mrf.mxu0
  %v1194 = vadd.f32 %v839, %v1193
  %1195 = vdwg.mxu0
  %1196 = vmatpush.msra.mxu0 0.0
  %1197 = vmatpush.msra.mxu0 0.0
  %1198 = vmatpush.msra.mxu0 0.0
  %1199 = vmatpush.msra.mxu0 0.0
  %1200 = vmatpush.msra.mxu0 0.0
  %1201 = vmatpush.msra.mxu0 0.0
  %1202 = vmatpush.msra.mxu0 0.0
  %1203 = vmatpush.msra.mxu0 0.0
  %1204 = vmatpush.msra.mxu0 0.0
  %1205 = vmatpush.msra.mxu0 0.0
  %1206 = vmatpush.msra.mxu0 0.0
  %1207 = vmatpush.msra.mxu0 0.0
  %1208 = vmatpush.msra.mxu0 %v791
  %1209 = vmatpush.msra.mxu0 %v790
  %1210 = vmatpush.msra.mxu0 %v789
  %1211 = vmatpush.msra.mxu0 %v788
  %1212 = vmatmul.f32.gmra.mxu0 %v1174
  %v1213 = vpop.f32.mrf.mxu0
  %v1214 = vadd.f32 0.0, %v1213
  %1215 = vdwg.mxu0
  %v1216 = vadd.f32 %v720, %v1214
  %v1217 = vtanh.pop %v1216
  %v1218 = vadd.f32 %v1217, 1.0
  %v1219 = vmul.f32 %v1218, 0.5
  %v1220 = vmul.f32 %v1219, %v1164
  %1222 = vrot.lane.b32.xlu0 %v1217, 64
  %v1223 = vpop.permute.xlu0 %1222
  %v1225 = vmul.f32 %v1219, %v1223
  %1227 = vrot.lane.b32.xlu0 %v1225, 32
  %v1228 = vpop.permute.xlu0 %1227
  %v1230 = vadd.f32 %v1220, %v1228
  %v1231 = vtanh.pop %v1230
  %1233 = vrot.lane.b32.xlu0 %v1231, 64
  %v1234 = vpop.permute.xlu0 %1233
  %v1236 = vmul.f32 %v1219, %v1234
  %1238 = vrot.lane.b32.xlu0 %v1236, 32
  %v1239 = vpop.permute.xlu0 %1238
  %v1240 = vsel %vm253, %v1239, 0
  %1242 = vmatpush.msra.mxu0 0.0
  %1243 = vmatpush.msra.mxu0 0.0
  %1244 = vmatpush.msra.mxu0 0.0
  %1245 = vmatpush.msra.mxu0 0.0
  %1246 = vmatpush.msra.mxu0 0.0
  %1247 = vmatpush.msra.mxu0 0.0
  %1248 = vmatpush.msra.mxu0 0.0
  %1249 = vmatpush.msra.mxu0 0.0
  %1250 = vmatpush.msra.mxu0 0.0
  %1251 = vmatpush.msra.mxu0 0.0
  %1252 = vmatpush.msra.mxu0 0.0
  %1253 = vmatpush.msra.mxu0 0.0
  %1254 = vmatpush.msra.mxu0 %v795
  %1255 = vmatpush.msra.mxu0 %v794
  %1256 = vmatpush.msra.mxu0 %v793
  %1257 = vmatpush.msra.mxu0 %v792
  %1258 = vmatmul.f32.gmra.mxu0 %v1240
  %v1259 = vpop.f32.mrf.mxu0
  %v1260 = vadd.f32 %v839, %v1259
  %1261 = vdwg.mxu0
  %1262 = vmatpush.msra.mxu0 0.0
  %1263 = vmatpush.msra.mxu0 0.0
  %1264 = vmatpush.msra.mxu0 0.0
  %1265 = vmatpush.msra.mxu0 0.0
  %1266 = vmatpush.msra.mxu0 0.0
  %1267 = vmatpush.msra.mxu0 0.0
  %1268 = vmatpush.msra.mxu0 0.0
  %1269 = vmatpush.msra.mxu0 0.0
  %1270 = vmatpush.msra.mxu0 0.0
  %1271 = vmatpush.msra.mxu0 0.0
  %1272 = vmatpush.msra.mxu0 0.0
  %1273 = vmatpush.msra.mxu0 0.0
  %1274 = vmatpush.msra.mxu0 %v791
  %1275 = vmatpush.msra.mxu0 %v790
  %1276 = vmatpush.msra.mxu0 %v789
  %1277 = vmatpush.msra.mxu0 %v788
  %1278 = vmatmul.f32.gmra.mxu0 %v1240
  %v1279 = vpop.f32.mrf.mxu0
  %v1280 = vadd.f32 0.0, %v1279
  %1281 = vdwg.mxu0
  %v1282 = vadd.f32 %v786, %v1280
  %v1283 = vtanh.pop %v1282
  %v1284 = vadd.f32 %v1283, 1.0
  %v1285 = vmul.f32 %v1284, 0.5
  %v1286 = vmul.f32 %v1285, %v1230
  %1288 = vrot.lane.b32.xlu0 %v1283, 64
  %v1289 = vpop.permute.xlu0 %1288
  %v1291 = vmul.f32 %v1285, %v1289
  %1293 = vrot.lane.b32.xlu0 %v1291, 32
  %v1294 = vpop.permute.xlu0 %1293
  %v1296 = vadd.f32 %v1286, %v1294
  %v1297 = vtanh.pop %v1296
  %1299 = vrot.lane.b32.xlu0 %v1297, 64
  %v1300 = vpop.permute.xlu0 %1299
  %v1302 = vmul.f32 %v1285, %v1300
  %1304 = vrot.lane.b32.xlu0 %v1302, 32
  %v1305 = vpop.permute.xlu0 %1304
  %v1306 = vsel %vm253, %v1305, 0
  %1308 = vmatpush.msra.mxu0 0.0
  %1309 = vmatpush.msra.mxu0 0.0
  %1310 = vmatpush.msra.mxu0 0.0
  %1311 = vmatpush.msra.mxu0 0.0
  %1312 = vmatpush.msra.mxu0 0.0
  %1313 = vmatpush.msra.mxu0 0.0
  %1314 = vmatpush.msra.mxu0 0.0
  %1315 = vmatpush.msra.mxu0 0.0
  %1316 = vmatpush.msra.mxu0 0.0
  %1317 = vmatpush.msra.mxu0 0.0
  %1318 = vmatpush.msra.mxu0 0.0
  %1319 = vmatpush.msra.mxu0 0.0
  %1320 = vmatpush.msra.mxu0 %v795
  %1321 = vmatpush.msra.mxu0 %v794
  %1322 = vmatpush.msra.mxu0 %v793
  %1323 = vmatpush.msra.mxu0 %v792
  %1324 = vmatmul.f32.gmra.mxu0 %v1306
  %v1325 = vpop.f32.mrf.mxu0
  %v1326 = vadd.f32 %v839, %v1325
  %1327 = vdwg.mxu0
  %v1328 = vld [vmem:[%s8] sm:$0xf]
  %v1329 = vsel %vm41, 0.0, 0
  %v1332 = vsel %vm45, %v1328, 0
  %1334 = vmatpush.msra.mxu0 0.0
  %1335 = vmatpush.msra.mxu0 0.0
  %1336 = vmatpush.msra.mxu0 0.0
  %1337 = vmatpush.msra.mxu0 0.0
  %1338 = vmatpush.msra.mxu0 0.0
  %1339 = vmatpush.msra.mxu0 0.0
  %1340 = vmatpush.msra.mxu0 0.0
  %1341 = vmatpush.msra.mxu0 0.0
  %1342 = vmatpush.msra.mxu0 0.0
  %1343 = vmatpush.msra.mxu0 0.0
  %1344 = vmatpush.msra.mxu0 0.0
  %1345 = vmatpush.msra.mxu0 0.0
  %1346 = vmatpush.msra.mxu0 0.0
  %1347 = vmatpush.msra.mxu0 0.0
  %1348 = vmatpush.msra.mxu0 0.0
  %1349 = vmatpush.msra.mxu0 %v1332
  %1350 = vmatmul.f32.gmra.mxu0 %v1329
  %v1351 = vpop.f32.mrf.mxu0
  %v1352 = vadd.f32 0.0, %v1351
  %1353 = vdwg.mxu0
  %v1354 = vadd.f32 %v864, %v1352
  %v1355 = vtanh.pop %v1354
  %v1356 = vadd.f32 %v1355, 1.0
  %v1357 = vmul.f32 %v1356, 0.5
  %v1358 = vmul.f32 %v1357, 0.0
  %1360 = vrot.lane.b32.xlu0 %v1355, 120
  %v1361 = vpop.permute.xlu0 %1360
  %v1363 = vmul.f32 %v1357, %v1361
  %1365 = vrot.lane.b32.xlu0 %v1363, 4
  %v1366 = vpop.permute.xlu0 %1365
  %v1368 = vadd.f32 %v1358, %v1366
  %v1369 = vtanh.pop %v1368
  %1371 = vrot.lane.b32.xlu0 %v1369, 8
  %v1372 = vpop.permute.xlu0 %1371
  %v1374 = vmul.f32 %v1357, %v1372
  %1376 = vrot.lane.b32.xlu0 %v1374, 116
  %v1377 = vpop.permute.xlu0 %1376
  %v1378 = vsel %vm41, %v1377, 0
  %1380 = vmatpush.msra.mxu0 0.0
  %1381 = vmatpush.msra.mxu0 0.0
  %1382 = vmatpush.msra.mxu0 0.0
  %1383 = vmatpush.msra.mxu0 0.0
  %1384 = vmatpush.msra.mxu0 0.0
  %1385 = vmatpush.msra.mxu0 0.0
  %1386 = vmatpush.msra.mxu0 0.0
  %1387 = vmatpush.msra.mxu0 0.0
  %1388 = vmatpush.msra.mxu0 0.0
  %1389 = vmatpush.msra.mxu0 0.0
  %1390 = vmatpush.msra.mxu0 0.0
  %1391 = vmatpush.msra.mxu0 0.0
  %1392 = vmatpush.msra.mxu0 0.0
  %1393 = vmatpush.msra.mxu0 0.0
  %1394 = vmatpush.msra.mxu0 0.0
  %1395 = vmatpush.msra.mxu0 %v1332
  %1396 = vmatmul.f32.gmra.mxu0 %v1378
  %v1397 = vpop.f32.mrf.mxu0
  %v1398 = vadd.f32 0.0, %v1397
  %1399 = vdwg.mxu0
  %v1400 = vadd.f32 %v930, %v1398
  %v1401 = vtanh.pop %v1400
  %v1402 = vadd.f32 %v1401, 1.0
  %v1403 = vmul.f32 %v1402, 0.5
  %v1404 = vmul.f32 %v1403, %v1368
  %1406 = vrot.lane.b32.xlu0 %v1401, 120
  %v1407 = vpop.permute.xlu0 %1406
  %v1409 = vmul.f32 %v1403, %v1407
  %1411 = vrot.lane.b32.xlu0 %v1409, 4
  %v1412 = vpop.permute.xlu0 %1411
  %v1414 = vadd.f32 %v1404, %v1412
  %v1415 = vtanh.pop %v1414
  %1417 = vrot.lane.b32.xlu0 %v1415, 8
  %v1418 = vpop.permute.xlu0 %1417
  %v1420 = vmul.f32 %v1403, %v1418
  %1422 = vrot.lane.b32.xlu0 %v1420, 116
  %v1423 = vpop.permute.xlu0 %1422
  %v1424 = vsel %vm41, %v1423, 0
  %1426 = vmatpush.msra.mxu0 0.0
  %1427 = vmatpush.msra.mxu0 0.0
  %1428 = vmatpush.msra.mxu0 0.0
  %1429 = vmatpush.msra.mxu0 0.0
  %1430 = vmatpush.msra.mxu0 0.0
  %1431 = vmatpush.msra.mxu0 0.0
  %1432 = vmatpush.msra.mxu0 0.0
  %1433 = vmatpush.msra.mxu0 0.0
  %1434 = vmatpush.msra.mxu0 0.0
  %1435 = vmatpush.msra.mxu0 0.0
  %1436 = vmatpush.msra.mxu0 0.0
  %1437 = vmatpush.msra.mxu0 0.0
  %1438 = vmatpush.msra.mxu0 0.0
  %1439 = vmatpush.msra.mxu0 0.0
  %1440 = vmatpush.msra.mxu0 0.0
  %1441 = vmatpush.msra.mxu0 %v1332
  %1442 = vmatmul.f32.gmra.mxu0 %v1424
  %v1443 = vpop.f32.mrf.mxu0
  %v1444 = vadd.f32 0.0, %v1443
  %1445 = vdwg.mxu0
  %v1446 = vadd.f32 %v996, %v1444
  %v1447 = vtanh.pop %v1446
  %v1448 = vadd.f32 %v1447, 1.0
  %v1449 = vmul.f32 %v1448, 0.5
  %v1450 = vmul.f32 %v1449, %v1414
  %1452 = vrot.lane.b32.xlu0 %v1447, 120
  %v1453 = vpop.permute.xlu0 %1452
  %v1455 = vmul.f32 %v1449, %v1453
  %1457 = vrot.lane.b32.xlu0 %v1455, 4
  %v1458 = vpop.permute.xlu0 %1457
  %v1460 = vadd.f32 %v1450, %v1458
  %v1461 = vtanh.pop %v1460
  %1463 = vrot.lane.b32.xlu0 %v1461, 8
  %v1464 = vpop.permute.xlu0 %1463
  %v1466 = vmul.f32 %v1449, %v1464
  %1468 = vrot.lane.b32.xlu0 %v1466, 116
  %v1469 = vpop.permute.xlu0 %1468
  %v1470 = vsel %vm41, %v1469, 0
  %1472 = vmatpush.msra.mxu0 0.0
  %1473 = vmatpush.msra.mxu0 0.0
  %1474 = vmatpush.msra.mxu0 0.0
  %1475 = vmatpush.msra.mxu0 0.0
  %1476 = vmatpush.msra.mxu0 0.0
  %1477 = vmatpush.msra.mxu0 0.0
  %1478 = vmatpush.msra.mxu0 0.0
  %1479 = vmatpush.msra.mxu0 0.0
  %1480 = vmatpush.msra.mxu0 0.0
  %1481 = vmatpush.msra.mxu0 0.0
  %1482 = vmatpush.msra.mxu0 0.0
  %1483 = vmatpush.msra.mxu0 0.0
  %1484 = vmatpush.msra.mxu0 0.0
  %1485 = vmatpush.msra.mxu0 0.0
  %1486 = vmatpush.msra.mxu0 0.0
  %1487 = vmatpush.msra.mxu0 %v1332
  %1488 = vmatmul.f32.gmra.mxu0 %v1470
  %v1489 = vpop.f32.mrf.mxu0
  %v1490 = vadd.f32 0.0, %v1489
  %1491 = vdwg.mxu0
  %v1492 = vadd.f32 %v1062, %v1490
  %v1493 = vtanh.pop %v1492
  %v1494 = vadd.f32 %v1493, 1.0
  %v1495 = vmul.f32 %v1494, 0.5
  %v1496 = vmul.f32 %v1495, %v1460
  %1498 = vrot.lane.b32.xlu0 %v1493, 120
  %v1499 = vpop.permute.xlu0 %1498
  %v1501 = vmul.f32 %v1495, %v1499
  %1503 = vrot.lane.b32.xlu0 %v1501, 4
  %v1504 = vpop.permute.xlu0 %1503
  %v1506 = vadd.f32 %v1496, %v1504
  %v1507 = vtanh.pop %v1506
  %1509 = vrot.lane.b32.xlu0 %v1507, 8
  %v1510 = vpop.permute.xlu0 %1509
  %v1512 = vmul.f32 %v1495, %v1510
  %1514 = vrot.lane.b32.xlu0 %v1512, 116
  %v1515 = vpop.permute.xlu0 %1514
  %v1516 = vsel %vm41, %v1515, 0
  %1518 = vmatpush.msra.mxu0 0.0
  %1519 = vmatpush.msra.mxu0 0.0
  %1520 = vmatpush.msra.mxu0 0.0
  %1521 = vmatpush.msra.mxu0 0.0
  %1522 = vmatpush.msra.mxu0 0.0
  %1523 = vmatpush.msra.mxu0 0.0
  %1524 = vmatpush.msra.mxu0 0.0
  %1525 = vmatpush.msra.mxu0 0.0
  %1526 = vmatpush.msra.mxu0 0.0
  %1527 = vmatpush.msra.mxu0 0.0
  %1528 = vmatpush.msra.mxu0 0.0
  %1529 = vmatpush.msra.mxu0 0.0
  %1530 = vmatpush.msra.mxu0 0.0
  %1531 = vmatpush.msra.mxu0 0.0
  %1532 = vmatpush.msra.mxu0 0.0
  %1533 = vmatpush.msra.mxu0 %v1332
  %1534 = vmatmul.f32.gmra.mxu0 %v1516
  %v1535 = vpop.f32.mrf.mxu0
  %v1536 = vadd.f32 0.0, %v1535
  %1537 = vdwg.mxu0
  %v1538 = vadd.f32 %v1128, %v1536
  %v1539 = vtanh.pop %v1538
  %v1540 = vadd.f32 %v1539, 1.0
  %v1541 = vmul.f32 %v1540, 0.5
  %v1542 = vmul.f32 %v1541, %v1506
  %1544 = vrot.lane.b32.xlu0 %v1539, 120
  %v1545 = vpop.permute.xlu0 %1544
  %v1547 = vmul.f32 %v1541, %v1545
  %1549 = vrot.lane.b32.xlu0 %v1547, 4
  %v1550 = vpop.permute.xlu0 %1549
  %v1552 = vadd.f32 %v1542, %v1550
  %v1553 = vtanh.pop %v1552
  %1555 = vrot.lane.b32.xlu0 %v1553, 8
  %v1556 = vpop.permute.xlu0 %1555
  %v1558 = vmul.f32 %v1541, %v1556
  %1560 = vrot.lane.b32.xlu0 %v1558, 116
  %v1561 = vpop.permute.xlu0 %1560
  %v1562 = vsel %vm41, %v1561, 0
  %1564 = vmatpush.msra.mxu0 0.0
  %1565 = vmatpush.msra.mxu0 0.0
  %1566 = vmatpush.msra.mxu0 0.0
  %1567 = vmatpush.msra.mxu0 0.0
  %1568 = vmatpush.msra.mxu0 0.0
  %1569 = vmatpush.msra.mxu0 0.0
  %1570 = vmatpush.msra.mxu0 0.0
  %1571 = vmatpush.msra.mxu0 0.0
  %1572 = vmatpush.msra.mxu0 0.0
  %1573 = vmatpush.msra.mxu0 0.0
  %1574 = vmatpush.msra.mxu0 0.0
  %1575 = vmatpush.msra.mxu0 0.0
  %1576 = vmatpush.msra.mxu0 0.0
  %1577 = vmatpush.msra.mxu0 0.0
  %1578 = vmatpush.msra.mxu0 0.0
  %1579 = vmatpush.msra.mxu0 %v1332
  %1580 = vmatmul.f32.gmra.mxu0 %v1562
  %v1581 = vpop.f32.mrf.mxu0
  %v1582 = vadd.f32 0.0, %v1581
  %1583 = vdwg.mxu0
  %v1584 = vadd.f32 %v1194, %v1582
  %v1585 = vtanh.pop %v1584
  %v1586 = vadd.f32 %v1585, 1.0
  %v1587 = vmul.f32 %v1586, 0.5
  %v1588 = vmul.f32 %v1587, %v1552
  %1590 = vrot.lane.b32.xlu0 %v1585, 120
  %v1591 = vpop.permute.xlu0 %1590
  %v1593 = vmul.f32 %v1587, %v1591
  %1595 = vrot.lane.b32.xlu0 %v1593, 4
  %v1596 = vpop.permute.xlu0 %1595
  %v1598 = vadd.f32 %v1588, %v1596
  %v1599 = vtanh.pop %v1598
  %1601 = vrot.lane.b32.xlu0 %v1599, 8
  %v1602 = vpop.permute.xlu0 %1601
  %v1604 = vmul.f32 %v1587, %v1602
  %1606 = vrot.lane.b32.xlu0 %v1604, 116
  %v1607 = vpop.permute.xlu0 %1606
  %v1608 = vsel %vm41, %v1607, 0
  %1610 = vmatpush.msra.mxu0 0.0
  %1611 = vmatpush.msra.mxu0 0.0
  %1612 = vmatpush.msra.mxu0 0.0
  %1613 = vmatpush.msra.mxu0 0.0
  %1614 = vmatpush.msra.mxu0 0.0
  %1615 = vmatpush.msra.mxu0 0.0
  %1616 = vmatpush.msra.mxu0 0.0
  %1617 = vmatpush.msra.mxu0 0.0
  %1618 = vmatpush.msra.mxu0 0.0
  %1619 = vmatpush.msra.mxu0 0.0
  %1620 = vmatpush.msra.mxu0 0.0
  %1621 = vmatpush.msra.mxu0 0.0
  %1622 = vmatpush.msra.mxu0 0.0
  %1623 = vmatpush.msra.mxu0 0.0
  %1624 = vmatpush.msra.mxu0 0.0
  %1625 = vmatpush.msra.mxu0 %v1332
  %1626 = vmatmul.f32.gmra.mxu0 %v1608
  %v1627 = vpop.f32.mrf.mxu0
  %v1628 = vadd.f32 0.0, %v1627
  %1629 = vdwg.mxu0
  %v1630 = vadd.f32 %v1260, %v1628
  %v1631 = vtanh.pop %v1630
  %v1632 = vadd.f32 %v1631, 1.0
  %v1633 = vmul.f32 %v1632, 0.5
  %v1634 = vmul.f32 %v1633, %v1598
  %1636 = vrot.lane.b32.xlu0 %v1631, 120
  %v1637 = vpop.permute.xlu0 %1636
  %v1639 = vmul.f32 %v1633, %v1637
  %1641 = vrot.lane.b32.xlu0 %v1639, 4
  %v1642 = vpop.permute.xlu0 %1641
  %v1644 = vadd.f32 %v1634, %v1642
  %v1645 = vtanh.pop %v1644
  %1647 = vrot.lane.b32.xlu0 %v1645, 8
  %v1648 = vpop.permute.xlu0 %1647
  %v1650 = vmul.f32 %v1633, %v1648
  %1652 = vrot.lane.b32.xlu0 %v1650, 116
  %v1653 = vpop.permute.xlu0 %1652
  %v1654 = vsel %vm41, %v1653, 0
  %1656 = vmatpush.msra.mxu0 0.0
  %1657 = vmatpush.msra.mxu0 0.0
  %1658 = vmatpush.msra.mxu0 0.0
  %1659 = vmatpush.msra.mxu0 0.0
  %1660 = vmatpush.msra.mxu0 0.0
  %1661 = vmatpush.msra.mxu0 0.0
  %1662 = vmatpush.msra.mxu0 0.0
  %1663 = vmatpush.msra.mxu0 0.0
  %1664 = vmatpush.msra.mxu0 0.0
  %1665 = vmatpush.msra.mxu0 0.0
  %1666 = vmatpush.msra.mxu0 0.0
  %1667 = vmatpush.msra.mxu0 0.0
  %1668 = vmatpush.msra.mxu0 0.0
  %1669 = vmatpush.msra.mxu0 0.0
  %1670 = vmatpush.msra.mxu0 0.0
  %1671 = vmatpush.msra.mxu0 %v1332
  %1672 = vmatmul.f32.gmra.mxu0 %v1654
  %v1673 = vpop.f32.mrf.mxu0
  %v1674 = vadd.f32 0.0, %v1673
  %1675 = vdwg.mxu0
  %v1676 = vadd.f32 %v1326, %v1674
  %v1677 = vtanh.pop %v1676
  %v1678 = vadd.f32 %v1677, 1.0
  %v1679 = vmul.f32 %v1678, 0.5
  %v1680 = vmul.f32 %v1679, %v1644
  %1682 = vrot.lane.b32.xlu0 %v1677, 120
  %v1683 = vpop.permute.xlu0 %1682
  %v1685 = vmul.f32 %v1679, %v1683
  %1687 = vrot.lane.b32.xlu0 %v1685, 4
  %v1688 = vpop.permute.xlu0 %1687
  %v1690 = vadd.f32 %v1680, %v1688
  %v1691 = vtanh.pop %v1690
  %1693 = vrot.lane.b32.xlu0 %v1691, 8
  %v1694 = vpop.permute.xlu0 %1693
  %v1696 = vmul.f32 %v1679, %v1694
  %1698 = vrot.lane.b32.xlu0 %v1696, 116
  %v1699 = vpop.permute.xlu0 %1698
  %1701 = vst.msk [vmem:[%s10] sm:$0xff] %vm41, %v1699
  // Predicated region
  $region42: #{tpu_custom_call.1} parent=0 // pred_check
    _
  $region43: #{tpu_custom_call.1} parent=0 // pred_check_branch
    %1703 = sbr.rel (0) target = $region45
  $region44: #{tpu_custom_call.1} parent=0 // pred_region
    _
  $region45: #{tpu_custom_call.1} parent=0 // pred_fallthru
    _
  // Predicated region
  $region46: #{tpu_custom_call.1} parent=0 // pred_check
    _
  $region47: #{tpu_custom_call.1} parent=0 // pred_check_branch
    %1705 = sbr.rel (0) target = $region49
  $region48: #{tpu_custom_call.1} parent=0 // pred_region
    _
  $region49: #{tpu_custom_call.1} parent=0 // pred_fallthru
    _

</llo_original>
